<compile_context>
chip_gen: v5e
topology: v5e:2x2
jax: 0.10.0
libtpu: 0.0.40
codegen_flags: <defaults>
</compile_context>

<pallas_src>
import functools

import jax
import jax.numpy as jnp
from jax import lax
from jax.experimental import pallas as pl
from jax.experimental.pallas import tpu as pltpu

# ---------------- configuration (Tacotron2 encoder, shrunk for the demo) ----------
DIM_I = 16            # conf.dim_i
CONV_DIM_C = 32       # conf.conv_dim_c
CONV_SIZE_K = 5       # conf.conv_size_k
NUM_CONV_LAYERS = 3   # conf.num_conv_layers
CONV_BATCH_NORM = True
CONV_RESIDUAL = False
BIDIRECTIONAL = True
NUM_RNN_LAYERS = 1    # kernel implements the (default) single-layer LSTM case
DIM_O = 32            # conf.dim_o
DIM_LSTM = DIM_O // 2 if BIDIRECTIONAL else DIM_O
BN_EPS = 1e-5
PAD = (CONV_SIZE_K - 1) // 2

B, T = 2, 8           # small demo shapes


# ======================= fused encoder kernel (one batch element / grid step) ======
def _encoder_kernel(ilens_ref, x_ref, fc_w_ref, fc_b_ref, conv_w_ref, conv_b_ref,
                    wi_ref, bi_ref, whh_ref, o_ref, act_s, gate_s,
                    *, seq_len, pad, ksize, n_layers, hidden, residual):
    H = hidden
    Tm1 = seq_len - 1
    b_idx = pl.program_id(0)

    # ---- stage 0: zero the activation scratch so the conv halo rows stay 0 --------
    act_s[...] = jnp.zeros_like(act_s)

    # ---- stage 1: segFC (Linear): one (T, Di) @ (Di, C) bf16 matmul ----------------
    x = x_ref[0].astype(jnp.bfloat16)                                   # (T, Di)
    y = jnp.dot(x, fc_w_ref[...], preferred_element_type=jnp.float32) + fc_b_ref[...]
    act_s[pad:pad + seq_len, :] = y

    # ---- stage 2: conv stack: each layer = ONE im2col matmul + folded BN + ReLU ----
    # TODO(synk): eval-mode semantics only (Dropout = identity, BN running stats).
    for l in range(n_layers):
        im2col = jnp.concatenate(
            [act_s[k:k + seq_len, :] for k in range(ksize)], axis=-1)   # (T, K*C)
        acc = jnp.dot(im2col.astype(jnp.bfloat16), conv_w_ref[l],
                      preferred_element_type=jnp.float32) + conv_b_ref[l]
        y = jnp.maximum(acc, 0.0)
        if residual:
            # read-before-write of the same rows; keep this ordering if restructured
            y = y + act_s[pad:pad + seq_len, :]
        act_s[pad:pad + seq_len, :] = y

    # ---- stage 3: LSTM input projection, both directions in one (T, C)@(C, 8H) -----
    # gate-column layout (8H = 128 lanes): [i_f i_b f_f f_b o_f o_b g_f g_b]
    act = act_s[pad:pad + seq_len, :].astype(jnp.bfloat16)
    gx = jnp.dot(act, wi_ref[...], preferred_element_type=jnp.float32) + bi_ref[...]

    col8 = lax.broadcasted_iota(jnp.int32, (1, 8 * H), 1)
    fwd8 = (col8 % (2 * H)) < H                          # fwd columns of gate layout
    col2 = lax.broadcasted_iota(jnp.int32, (1, 2 * H), 1)
    fwd2 = col2 < H                                      # fwd half of state layout

    # Pre-merge fwd/bwd time indexing into a VMEM slab: gate_s[t] holds fwd gate
    # inputs for time t and bwd gate inputs for time T-1-t, so each serial step
    # below does a single dense (1, 8H) load.
    # TODO(synk): for real-sized T (hundreds), use lax.fori_loop + pl.ds here.
    for t in range(seq_len):
        gate_s[t:t + 1, :] = jnp.where(fwd8, gx[t:t + 1, :],
                                       gx[Tm1 - t:Tm1 - t + 1, :])

    # ---- stage 4: bidirectional recurrence, fwd+bwd interleaved, state [h_f | h_b] --
    # whh is (2H, 8H) block-diagonal: 8H = 128 lanes exactly fills one MXU pass at
    # demo size.  TODO(synk): at the real H=256 config split into two (H, 4H)
    # per-direction recurrent matmuls (half the MACs, no structural zeros).
    whh = whh_ref[...]
    ilen = ilens_ref[b_idx]                              # SMEM scalar (control data)
    h = jnp.zeros((1, 2 * H), jnp.float32)
    c = jnp.zeros((1, 2 * H), jnp.float32)
    for t in range(seq_len):                             # static unroll (T is small)
        g = gate_s[t:t + 1, :] + jnp.dot(h, whh, preferred_element_type=jnp.float32)
        sig = jax.nn.sigmoid(g[:, 0:6 * H])              # one EUP pass: i, f, o gates
        i_g = sig[:, 0:2 * H]
        f_g = sig[:, 2 * H:4 * H]
        o_g = sig[:, 4 * H:6 * H]
        g_g = jnp.tanh(g[:, 6 * H:8 * H])                # one EUP pass: g gate
        c_new = f_g * c + i_g * g_g
        h_new = o_g * jnp.tanh(c_new)

        # packed-sequence masking: fwd valid iff t < ilen, bwd valid iff T-1-t < ilen
        t_eff = jnp.where(fwd2, t, Tm1 - t)              # (1, 2H)
        valid = t_eff < ilen
        out_v = jnp.where(valid, h_new, 0.0)
        # in-loop stores (free live ranges): fwd half at time t, bwd half at T-1-t
        o_ref[:, t:t + 1, 0:H] = out_v[:, None, 0:H]
        o_ref[:, Tm1 - t:Tm1 - t + 1, H:2 * H] = out_v[:, None, H:2 * H]
        h = jnp.where(valid, h_new, h)
        c = jnp.where(valid, c_new, c)


# ======================= wrapper ===================================================
def taco2_encoder(packed, xs, ilens):
    """xs: (B, T_max, dim_i), ilens: (B,) -> ((B, T_max, dim_o), hlens)."""
    Bv, Tv, Di = xs.shape
    C = CONV_DIM_C
    H = DIM_LSTM
    Tp = Tv + 2 * PAD
    L = NUM_CONV_LAYERS
    K = CONV_SIZE_K

    kern = functools.partial(
        _encoder_kernel, seq_len=Tv, pad=PAD, ksize=K,
        n_layers=L, hidden=H, residual=CONV_RESIDUAL)

    out = pl.pallas_call(
        kern,
        out_shape=jax.ShapeDtypeStruct((Bv, Tv, 2 * H), jnp.float32),
        grid_spec=pltpu.PrefetchScalarGridSpec(
            num_scalar_prefetch=1,                 # ilens -> SMEM
            grid=(Bv,),                            # one sample per step: pipelined, 2-TC on v7x
            in_specs=[
                pl.BlockSpec((1, Tv, Di), lambda b, il: (b, 0, 0)),     # xs (per-sample)
                pl.BlockSpec((Di, C), lambda b, il: (0, 0)),            # segFC weight (bf16)
                pl.BlockSpec((1, C), lambda b, il: (0, 0)),             # segFC bias
                pl.BlockSpec((L, K * C, C), lambda b, il: (0, 0, 0)),   # conv im2col w (BN folded, bf16)
                pl.BlockSpec((L, 1, C), lambda b, il: (0, 0, 0)),       # conv b (BN folded)
                pl.BlockSpec((C, 8 * H), lambda b, il: (0, 0)),         # LSTM W_ih both dirs (bf16)
                pl.BlockSpec((1, 8 * H), lambda b, il: (0, 0)),         # LSTM bias both dirs
                pl.BlockSpec((2 * H, 8 * H), lambda b, il: (0, 0)),     # LSTM W_hh block-diag
            ],
            out_specs=pl.BlockSpec((1, Tv, 2 * H), lambda b, il: (b, 0, 0)),
            scratch_shapes=[
                pltpu.VMEM((Tp, C), jnp.float32),        # activations + conv halo
                pltpu.VMEM((Tv, 8 * H), jnp.float32),    # pre-merged LSTM gate inputs
            ],
        ),
        compiler_params=pltpu.CompilerParams(
            dimension_semantics=("parallel",),
            # Trivial for the demo; re-derive (<= ~48 MiB per-iteration footprint incl.
            # double-buffered blocks) for the real 512-ch config on v7x's 64 MiB VMEM.
            vmem_limit_bytes=32 * 1024 * 1024,
        ),
    )(ilens.astype(jnp.int32), xs,
      packed["fc_w"], packed["fc_b"], packed["conv_w"], packed["conv_b"],
      packed["wi"], packed["bi"], packed["whh"])
    # pad_packed_sequence semantics: padded positions are 0 (enforced in-kernel),
    # hlens == ilens.
    return out, ilens


# ======================= parameter init (PyTorch-equivalent, deterministic) ========
def init_params(key):
    keys = iter(jax.random.split(key, 64))
    p = {}

    # segFC (nn.Linear default init): U(-1/sqrt(fan_in), 1/sqrt(fan_in))
    bound = 1.0 / (DIM_I ** 0.5)
    p["fc_w"] = jax.random.uniform(next(keys), (DIM_I, CONV_DIM_C), jnp.float32, -bound, bound)
    p["fc_b"] = jax.random.uniform(next(keys), (CONV_DIM_C,), jnp.float32, -bound, bound)

    # Conv layers: xavier_uniform with relu gain (encoder_init), bias=False; BN defaults.
    gain = 2.0 ** 0.5
    fan = CONV_DIM_C * CONV_SIZE_K
    a = gain * (6.0 / (fan + fan)) ** 0.5
    p["convs"] = []
    for _ in range(NUM_CONV_LAYERS):
        w = jax.random.uniform(next(keys), (CONV_DIM_C, CONV_DIM_C, CONV_SIZE_K),
                               jnp.float32, -a, a)           # torch (C_out, C_in, K)
        p["convs"].append(dict(
            w=jnp.transpose(w, (2, 1, 0)),                   # (K, C_in, C_out)
            gamma=jnp.ones((CONV_DIM_C,), jnp.float32),
            beta=jnp.zeros((CONV_DIM_C,), jnp.float32),
            mean=jnp.zeros((CONV_DIM_C,), jnp.float32),
            var=jnp.ones((CONV_DIM_C,), jnp.float32),
        ))

    # LSTM (nn.LSTM default init): U(-1/sqrt(H), 1/sqrt(H)); combined bias = b_ih + b_hh.
    H = DIM_LSTM
    hb = 1.0 / (H ** 0.5)

    def lstm_dir():
        w_ih = jax.random.uniform(next(keys), (4 * H, CONV_DIM_C), jnp.float32, -hb, hb)
        w_hh = jax.random.uniform(next(keys), (4 * H, H), jnp.float32, -hb, hb)
        b_ih = jax.random.uniform(next(keys), (4 * H,), jnp.float32, -hb, hb)
        b_hh = jax.random.uniform(next(keys), (4 * H,), jnp.float32, -hb, hb)
        return (w_ih.T, w_hh.T, b_ih + b_hh)   # (C,4H), (H,4H), (4H,), torch gate order i,f,g,o

    p["lstm_f"] = lstm_dir()
    p["lstm_b"] = lstm_dir()
    return p


def pack_params(p):
    """Fold eval-mode BN into the conv weights, reshape them for im2col, and build
    the combined biLSTM weights with the [i_f i_b f_f f_b o_f o_b g_f g_b] layout."""
    C = CONV_DIM_C
    H = DIM_LSTM
    K = CONV_SIZE_K

    # --- BN folding: y = conv*scale + (beta - mean*scale), scale = gamma*rsqrt(var+eps)
    conv_w, conv_b = [], []
    for cp in p["convs"]:
        scale = cp["gamma"] * lax.rsqrt(cp["var"] + BN_EPS)
        w = cp["w"] * scale[None, None, :]                   # (K, C_in, C_out), scaled C_out
        conv_w.append(w.reshape(K * C, C))                   # im2col layout: row = k*C + c_in
        conv_b.append((cp["beta"] - cp["mean"] * scale).reshape(1, C))
    conv_w = jnp.stack(conv_w, axis=0).astype(jnp.bfloat16)  # (L, K*C, C) bf16
    conv_b = jnp.stack(conv_b, axis=0)                       # (L, 1, C) f32

    # --- biLSTM: interleave per-gate columns -> [i_f i_b f_f f_b o_f o_b g_f g_b]
    wif, whf, bf_ = p["lstm_f"]
    wib, whb, bb_ = p["lstm_b"]

    def interleave(a_f, a_b):
        # torch gate order along 4H is [i, f, g, o]; emit gates in order i, f, o, g
        blocks = []
        for gidx in (0, 1, 3, 2):
            blocks.append(a_f[..., gidx * H:(gidx + 1) * H])
            blocks.append(a_b[..., gidx * H:(gidx + 1) * H])
        return jnp.concatenate(blocks, axis=-1)

    wi = interleave(wif, wib).astype(jnp.bfloat16)           # (C, 8H) bf16
    bi = interleave(bf_[None, :], bb_[None, :])              # (1, 8H) f32
    zeros = jnp.zeros((H, 4 * H), jnp.float32)
    whh = interleave(jnp.concatenate([whf, zeros], axis=0),  # rows 0:H   -> h_fwd
                     jnp.concatenate([zeros, whb], axis=0))  # rows H:2H  -> h_bwd
    # whh is block-diagonal: [h_f | h_b] @ whh routes each direction to its own gates.

    return dict(fc_w=p["fc_w"].astype(jnp.bfloat16),
                fc_b=p["fc_b"].reshape(1, C),
                conv_w=conv_w, conv_b=conv_b, wi=wi, bi=bi, whh=whh)


if __name__ == "__main__":
    key = jax.random.PRNGKey(0)
    kx, kp = jax.random.split(key)
    xs = jax.random.normal(kx, (B, T, DIM_I), jnp.float32)   # (Batch, T_max, Feature)
    ilens = jnp.array([T, T - 2], dtype=jnp.int32)           # sorted descending (pack semantics)
    params = init_params(kp)
    packed = pack_params(params)

    out, hlens = taco2_encoder(packed, xs, ilens)
    out = jax.block_until_ready(out)

    assert out.shape == (B, T, DIM_O), out.shape
    assert bool(jnp.all(jnp.isfinite(out)))
    # padded positions of the shorter sequence must be zero (pad_packed_sequence semantics)
    assert bool(jnp.all(out[1, T - 2:, :] == 0.0))
    assert bool(jnp.all(hlens == ilens))
    print("KERNEL_OK")
</pallas_src>

<mosaic_0001>
module attributes {stable_mosaic.version = 11 : i64} {
  func.func @_encoder_kernel(%arg0: i32, %arg1: memref<2xi32, #tpu.memory_space<smem>>, %arg2: memref<1x8x16xf32, #tpu.memory_space<vmem>>, %arg3: memref<16x32xbf16, #tpu.memory_space<vmem>>, %arg4: memref<1x32xf32, #tpu.memory_space<vmem>>, %arg5: memref<3x160x32xbf16, #tpu.memory_space<vmem>>, %arg6: memref<3x1x32xf32, #tpu.memory_space<vmem>>, %arg7: memref<32x128xbf16, #tpu.memory_space<vmem>>, %arg8: memref<1x128xf32, #tpu.memory_space<vmem>>, %arg9: memref<32x128xf32, #tpu.memory_space<vmem>>, %arg10: memref<1x8x32xf32, #tpu.memory_space<vmem>>, %arg11: memref<12x32xf32, #tpu.memory_space<vmem>>, %arg12: memref<8x128xf32, #tpu.memory_space<vmem>>) attributes {dimension_semantics = [#tpu.dimension_semantics<parallel>], iteration_bounds = array<i64: 2>, scalar_prefetch = 1 : i64, scratch_operands = 2 : i64, tpu.core_type = #tpu.core_type<tc>, window_params = [{transform_indices = @transform_0, window_bounds = array<i64: 1, 8, 16>}, {pipeline_mode = #tpu.pipeline_mode<synchronous>, transform_indices = @transform_1, window_bounds = array<i64: 16, 32>}, {pipeline_mode = #tpu.pipeline_mode<synchronous>, transform_indices = @transform_2, window_bounds = array<i64: 1, 32>}, {pipeline_mode = #tpu.pipeline_mode<synchronous>, transform_indices = @transform_3, window_bounds = array<i64: 3, 160, 32>}, {pipeline_mode = #tpu.pipeline_mode<synchronous>, transform_indices = @transform_4, window_bounds = array<i64: 3, 1, 32>}, {pipeline_mode = #tpu.pipeline_mode<synchronous>, transform_indices = @transform_5, window_bounds = array<i64: 32, 128>}, {pipeline_mode = #tpu.pipeline_mode<synchronous>, transform_indices = @transform_6, window_bounds = array<i64: 1, 128>}, {pipeline_mode = #tpu.pipeline_mode<synchronous>, transform_indices = @transform_7, window_bounds = array<i64: 32, 128>}, {transform_indices = @transform_8, window_bounds = array<i64: 1, 8, 32>}]} {
    %cst = arith.constant 0.000000e+00 : f32
    %0 = vector.broadcast %cst : f32 to vector<12x32xf32>
    %c0 = arith.constant 0 : index
    %c0_0 = arith.constant 0 : index
    %1 = vector.load %arg11[%c0, %c0_0] : memref<12x32xf32, #tpu.memory_space<vmem>>, vector<12x32xf32>
    tpu.vector_store %arg11[%c0, %c0_0], %0 {strides = array<i32>} : memref<12x32xf32, #tpu.memory_space<vmem>>, vector<12x32xf32>,
    %c0_1 = arith.constant 0 : index
    %c0_2 = arith.constant 0 : index
    %c0_3 = arith.constant 0 : index
    %2 = vector.load %arg2[%c0_1, %c0_2, %c0_3] : memref<1x8x16xf32, #tpu.memory_space<vmem>>, vector<1x8x16xf32>
    %3 = vector.shape_cast %2 : vector<1x8x16xf32> to vector<8x16xf32>
    %4 = arith.truncf %3 : vector<8x16xf32> to vector<8x16xbf16>
    %c0_4 = arith.constant 0 : index
    %c0_5 = arith.constant 0 : index
    %5 = vector.load %arg3[%c0_4, %c0_5] : memref<16x32xbf16, #tpu.memory_space<vmem>>, vector<16x32xbf16>
    %cst_6 = arith.constant dense<0.000000e+00> : vector<8x32xf32>
    %6 = tpu.matmul %4, %5, %cst_6 {dimension_numbers = #tpu.dot_dimension_numbers<[1], [0], [0], [1], [0, 0, 1, 1], [], []>} : vector<8x16xbf16>, vector<16x32xbf16>, vector<8x32xf32> -> vector<8x32xf32>
    %c0_7 = arith.constant 0 : index
    %c0_8 = arith.constant 0 : index
    %7 = vector.load %arg4[%c0_7, %c0_8] : memref<1x32xf32, #tpu.memory_space<vmem>>, vector<1x32xf32>
    %8 = vector.broadcast %7 : vector<1x32xf32> to vector<8x32xf32>
    %9 = arith.addf %6, %8 : vector<8x32xf32>
    %c2 = arith.constant 2 : index
    %c0_9 = arith.constant 0 : index
    %10 = vector.load %arg11[%c2, %c0_9] : memref<12x32xf32, #tpu.memory_space<vmem>>, vector<8x32xf32>
    tpu.vector_store %arg11[%c2, %c0_9], %9 {strides = array<i32>} : memref<12x32xf32, #tpu.memory_space<vmem>>, vector<8x32xf32>,
    %c0_10 = arith.constant 0 : index
    %c0_11 = arith.constant 0 : index
    %11 = vector.load %arg11[%c0_10, %c0_11] : memref<12x32xf32, #tpu.memory_space<vmem>>, vector<8x32xf32>
    %c1 = arith.constant 1 : index
    %c0_12 = arith.constant 0 : index
    %12 = vector.load %arg11[%c1, %c0_12] : memref<12x32xf32, #tpu.memory_space<vmem>>, vector<8x32xf32>
    %c2_13 = arith.constant 2 : index
    %c0_14 = arith.constant 0 : index
    %13 = vector.load %arg11[%c2_13, %c0_14] : memref<12x32xf32, #tpu.memory_space<vmem>>, vector<8x32xf32>
    %c3 = arith.constant 3 : index
    %c0_15 = arith.constant 0 : index
    %14 = vector.load %arg11[%c3, %c0_15] : memref<12x32xf32, #tpu.memory_space<vmem>>, vector<8x32xf32>
    %c4 = arith.constant 4 : index
    %c0_16 = arith.constant 0 : index
    %15 = vector.load %arg11[%c4, %c0_16] : memref<12x32xf32, #tpu.memory_space<vmem>>, vector<8x32xf32>
    %16 = tpu.concatenate %11, %12, %13, %14, %15 in 1 : vector<8x32xf32>, vector<8x32xf32>, vector<8x32xf32>, vector<8x32xf32>, vector<8x32xf32> -> vector<8x160xf32>
    %17 = arith.truncf %16 : vector<8x160xf32> to vector<8x160xbf16>
    %c0_17 = arith.constant 0 : index
    %c0_18 = arith.constant 0 : index
    %c0_19 = arith.constant 0 : index
    %18 = vector.load %arg5[%c0_17, %c0_18, %c0_19] : memref<3x160x32xbf16, #tpu.memory_space<vmem>>, vector<1x160x32xbf16>
    %19 = vector.shape_cast %18 : vector<1x160x32xbf16> to vector<160x32xbf16>
    %cst_20 = arith.constant dense<0.000000e+00> : vector<8x32xf32>
    %20 = tpu.matmul %17, %19, %cst_20 {dimension_numbers = #tpu.dot_dimension_numbers<[1], [0], [0], [1], [0, 0, 1, 1], [], []>} : vector<8x160xbf16>, vector<160x32xbf16>, vector<8x32xf32> -> vector<8x32xf32>
    %c0_21 = arith.constant 0 : index
    %c0_22 = arith.constant 0 : index
    %c0_23 = arith.constant 0 : index
    %21 = vector.load %arg6[%c0_21, %c0_22, %c0_23] : memref<3x1x32xf32, #tpu.memory_space<vmem>>, vector<1x1x32xf32>
    %22 = vector.shape_cast %21 : vector<1x1x32xf32> to vector<1x32xf32>
    %23 = vector.broadcast %22 : vector<1x32xf32> to vector<8x32xf32>
    %24 = arith.addf %20, %23 : vector<8x32xf32>
    %cst_24 = arith.constant 0.000000e+00 : f32
    %25 = vector.broadcast %cst_24 : f32 to vector<8x32xf32>
    %26 = arith.maximumf %24, %25 : vector<8x32xf32>
    %c2_25 = arith.constant 2 : index
    %c0_26 = arith.constant 0 : index
    %27 = vector.load %arg11[%c2_25, %c0_26] : memref<12x32xf32, #tpu.memory_space<vmem>>, vector<8x32xf32>
    tpu.vector_store %arg11[%c2_25, %c0_26], %26 {strides = array<i32>} : memref<12x32xf32, #tpu.memory_space<vmem>>, vector<8x32xf32>,
    %c0_27 = arith.constant 0 : index
    %c0_28 = arith.constant 0 : index
    %28 = vector.load %arg11[%c0_27, %c0_28] : memref<12x32xf32, #tpu.memory_space<vmem>>, vector<8x32xf32>
    %c1_29 = arith.constant 1 : index
    %c0_30 = arith.constant 0 : index
    %29 = vector.load %arg11[%c1_29, %c0_30] : memref<12x32xf32, #tpu.memory_space<vmem>>, vector<8x32xf32>
    %c2_31 = arith.constant 2 : index
    %c0_32 = arith.constant 0 : index
    %30 = vector.load %arg11[%c2_31, %c0_32] : memref<12x32xf32, #tpu.memory_space<vmem>>, vector<8x32xf32>
    %c3_33 = arith.constant 3 : index
    %c0_34 = arith.constant 0 : index
    %31 = vector.load %arg11[%c3_33, %c0_34] : memref<12x32xf32, #tpu.memory_space<vmem>>, vector<8x32xf32>
    %c4_35 = arith.constant 4 : index
    %c0_36 = arith.constant 0 : index
    %32 = vector.load %arg11[%c4_35, %c0_36] : memref<12x32xf32, #tpu.memory_space<vmem>>, vector<8x32xf32>
    %33 = tpu.concatenate %28, %29, %30, %31, %32 in 1 : vector<8x32xf32>, vector<8x32xf32>, vector<8x32xf32>, vector<8x32xf32>, vector<8x32xf32> -> vector<8x160xf32>
    %34 = arith.truncf %33 : vector<8x160xf32> to vector<8x160xbf16>
    %c1_37 = arith.constant 1 : index
    %c0_38 = arith.constant 0 : index
    %c0_39 = arith.constant 0 : index
    %35 = vector.load %arg5[%c1_37, %c0_38, %c0_39] : memref<3x160x32xbf16, #tpu.memory_space<vmem>>, vector<1x160x32xbf16>
    %36 = vector.shape_cast %35 : vector<1x160x32xbf16> to vector<160x32xbf16>
    %cst_40 = arith.constant dense<0.000000e+00> : vector<8x32xf32>
    %37 = tpu.matmul %34, %36, %cst_40 {dimension_numbers = #tpu.dot_dimension_numbers<[1], [0], [0], [1], [0, 0, 1, 1], [], []>} : vector<8x160xbf16>, vector<160x32xbf16>, vector<8x32xf32> -> vector<8x32xf32>
    %c1_41 = arith.constant 1 : index
    %c0_42 = arith.constant 0 : index
    %c0_43 = arith.constant 0 : index
    %38 = vector.load %arg6[%c1_41, %c0_42, %c0_43] : memref<3x1x32xf32, #tpu.memory_space<vmem>>, vector<1x1x32xf32>
    %39 = vector.shape_cast %38 : vector<1x1x32xf32> to vector<1x32xf32>
    %40 = vector.broadcast %39 : vector<1x32xf32> to vector<8x32xf32>
    %41 = arith.addf %37, %40 : vector<8x32xf32>
    %cst_44 = arith.constant 0.000000e+00 : f32
    %42 = vector.broadcast %cst_44 : f32 to vector<8x32xf32>
    %43 = arith.maximumf %41, %42 : vector<8x32xf32>
    %c2_45 = arith.constant 2 : index
    %c0_46 = arith.constant 0 : index
    %44 = vector.load %arg11[%c2_45, %c0_46] : memref<12x32xf32, #tpu.memory_space<vmem>>, vector<8x32xf32>
    tpu.vector_store %arg11[%c2_45, %c0_46], %43 {strides = array<i32>} : memref<12x32xf32, #tpu.memory_space<vmem>>, vector<8x32xf32>,
    %c0_47 = arith.constant 0 : index
    %c0_48 = arith.constant 0 : index
    %45 = vector.load %arg11[%c0_47, %c0_48] : memref<12x32xf32, #tpu.memory_space<vmem>>, vector<8x32xf32>
    %c1_49 = arith.constant 1 : index
    %c0_50 = arith.constant 0 : index
    %46 = vector.load %arg11[%c1_49, %c0_50] : memref<12x32xf32, #tpu.memory_space<vmem>>, vector<8x32xf32>
    %c2_51 = arith.constant 2 : index
    %c0_52 = arith.constant 0 : index
    %47 = vector.load %arg11[%c2_51, %c0_52] : memref<12x32xf32, #tpu.memory_space<vmem>>, vector<8x32xf32>
    %c3_53 = arith.constant 3 : index
    %c0_54 = arith.constant 0 : index
    %48 = vector.load %arg11[%c3_53, %c0_54] : memref<12x32xf32, #tpu.memory_space<vmem>>, vector<8x32xf32>
    %c4_55 = arith.constant 4 : index
    %c0_56 = arith.constant 0 : index
    %49 = vector.load %arg11[%c4_55, %c0_56] : memref<12x32xf32, #tpu.memory_space<vmem>>, vector<8x32xf32>
    %50 = tpu.concatenate %45, %46, %47, %48, %49 in 1 : vector<8x32xf32>, vector<8x32xf32>, vector<8x32xf32>, vector<8x32xf32>, vector<8x32xf32> -> vector<8x160xf32>
    %51 = arith.truncf %50 : vector<8x160xf32> to vector<8x160xbf16>
    %c2_57 = arith.constant 2 : index
    %c0_58 = arith.constant 0 : index
    %c0_59 = arith.constant 0 : index
    %52 = vector.load %arg5[%c2_57, %c0_58, %c0_59] : memref<3x160x32xbf16, #tpu.memory_space<vmem>>, vector<1x160x32xbf16>
    %53 = vector.shape_cast %52 : vector<1x160x32xbf16> to vector<160x32xbf16>
    %cst_60 = arith.constant dense<0.000000e+00> : vector<8x32xf32>
    %54 = tpu.matmul %51, %53, %cst_60 {dimension_numbers = #tpu.dot_dimension_numbers<[1], [0], [0], [1], [0, 0, 1, 1], [], []>} : vector<8x160xbf16>, vector<160x32xbf16>, vector<8x32xf32> -> vector<8x32xf32>
    %c2_61 = arith.constant 2 : index
    %c0_62 = arith.constant 0 : index
    %c0_63 = arith.constant 0 : index
    %55 = vector.load %arg6[%c2_61, %c0_62, %c0_63] : memref<3x1x32xf32, #tpu.memory_space<vmem>>, vector<1x1x32xf32>
    %56 = vector.shape_cast %55 : vector<1x1x32xf32> to vector<1x32xf32>
    %57 = vector.broadcast %56 : vector<1x32xf32> to vector<8x32xf32>
    %58 = arith.addf %54, %57 : vector<8x32xf32>
    %cst_64 = arith.constant 0.000000e+00 : f32
    %59 = vector.broadcast %cst_64 : f32 to vector<8x32xf32>
    %60 = arith.maximumf %58, %59 : vector<8x32xf32>
    %c2_65 = arith.constant 2 : index
    %c0_66 = arith.constant 0 : index
    %61 = vector.load %arg11[%c2_65, %c0_66] : memref<12x32xf32, #tpu.memory_space<vmem>>, vector<8x32xf32>
    tpu.vector_store %arg11[%c2_65, %c0_66], %60 {strides = array<i32>} : memref<12x32xf32, #tpu.memory_space<vmem>>, vector<8x32xf32>,
    %c2_67 = arith.constant 2 : index
    %c0_68 = arith.constant 0 : index
    %62 = vector.load %arg11[%c2_67, %c0_68] : memref<12x32xf32, #tpu.memory_space<vmem>>, vector<8x32xf32>
    %63 = arith.truncf %62 : vector<8x32xf32> to vector<8x32xbf16>
    %c0_69 = arith.constant 0 : index
    %c0_70 = arith.constant 0 : index
    %64 = vector.load %arg7[%c0_69, %c0_70] : memref<32x128xbf16, #tpu.memory_space<vmem>>, vector<32x128xbf16>
    %cst_71 = arith.constant dense<0.000000e+00> : vector<8x128xf32>
    %65 = tpu.matmul %63, %64, %cst_71 {dimension_numbers = #tpu.dot_dimension_numbers<[1], [0], [0], [1], [0, 0, 1, 1], [], []>} : vector<8x32xbf16>, vector<32x128xbf16>, vector<8x128xf32> -> vector<8x128xf32>
    %c0_72 = arith.constant 0 : index
    %c0_73 = arith.constant 0 : index
    %66 = vector.load %arg8[%c0_72, %c0_73] : memref<1x128xf32, #tpu.memory_space<vmem>>, vector<1x128xf32>
    %67 = vector.broadcast %66 : vector<1x128xf32> to vector<8x128xf32>
    %68 = arith.addf %65, %67 : vector<8x128xf32>
    %69 = tpu.iota {dimensions = array<i32: 1>} : vector<1x128xi32>
    %c32_i32 = arith.constant 32 : i32
    %c0_i32 = arith.constant 0 : i32
    %70 = arith.cmpi eq, %c32_i32, %c0_i32 : i32
    %c1_i32 = arith.constant 1 : i32
    %71 = arith.select %70, %c1_i32, %c32_i32 : i32
    %72 = vector.broadcast %71 : i32 to vector<1x128xi32>
    %73 = arith.remsi %69, %72 : vector<1x128xi32>
    %c0_i32_74 = arith.constant 0 : i32
    %74 = vector.broadcast %c0_i32_74 : i32 to vector<1x128xi32>
    %75 = arith.cmpi ne, %73, %74 : vector<1x128xi32>
    %c0_i32_75 = arith.constant 0 : i32
    %76 = vector.broadcast %c0_i32_75 : i32 to vector<1x128xi32>
    %77 = arith.cmpi slt, %73, %76 : vector<1x128xi32>
    %c0_i32_76 = arith.constant 0 : i32
    %78 = arith.cmpi slt, %71, %c0_i32_76 : i32
    %79 = vector.broadcast %78 : i1 to vector<1x128xi1>
    %80 = vector.broadcast %79 : vector<1x128xi1> to vector<1x128xi1>
    %81 = arith.xori %77, %80 : vector<1x128xi1>
    %82 = arith.andi %81, %75 : vector<1x128xi1>
    %83 = vector.broadcast %71 : i32 to vector<1x128xi32>
    %84 = arith.addi %73, %83 : vector<1x128xi32>
    %85 = arith.select %82, %84, %73 : vector<1x128xi1>, vector<1x128xi32>
    %c16_i32 = arith.constant 16 : i32
    %86 = vector.broadcast %c16_i32 : i32 to vector<1x128xi32>
    %87 = arith.cmpi slt, %85, %86 : vector<1x128xi32>
    %88 = tpu.iota {dimensions = array<i32: 1>} : vector<1x32xi32>
    %c16_i32_77 = arith.constant 16 : i32
    %89 = vector.broadcast %c16_i32_77 : i32 to vector<1x32xi32>
    %90 = arith.cmpi slt, %88, %89 : vector<1x32xi32>
    %91 = vector.extract_strided_slice %68 {offsets = [0, 0], sizes = [1, 128], strides = [1, 1]} : vector<8x128xf32> to vector<1x128xf32>
    %92 = vector.extract_strided_slice %68 {offsets = [7, 0], sizes = [1, 128], strides = [1, 1]} : vector<8x128xf32> to vector<1x128xf32>
    %93 = arith.select %87, %91, %92 : vector<1x128xi1>, vector<1x128xf32>
    %c0_78 = arith.constant 0 : index
    %c0_79 = arith.constant 0 : index
    %94 = vector.load %arg12[%c0_78, %c0_79] : memref<8x128xf32, #tpu.memory_space<vmem>>, vector<1x128xf32>
    tpu.vector_store %arg12[%c0_78, %c0_79], %93 {strides = array<i32>} : memref<8x128xf32, #tpu.memory_space<vmem>>, vector<1x128xf32>,
    %95 = vector.extract_strided_slice %68 {offsets = [1, 0], sizes = [1, 128], strides = [1, 1]} : vector<8x128xf32> to vector<1x128xf32>
    %96 = vector.extract_strided_slice %68 {offsets = [6, 0], sizes = [1, 128], strides = [1, 1]} : vector<8x128xf32> to vector<1x128xf32>
    %97 = arith.select %87, %95, %96 : vector<1x128xi1>, vector<1x128xf32>
    %c1_80 = arith.constant 1 : index
    %c0_81 = arith.constant 0 : index
    %98 = vector.load %arg12[%c1_80, %c0_81] : memref<8x128xf32, #tpu.memory_space<vmem>>, vector<1x128xf32>
    tpu.vector_store %arg12[%c1_80, %c0_81], %97 {strides = array<i32>} : memref<8x128xf32, #tpu.memory_space<vmem>>, vector<1x128xf32>,
    %99 = vector.extract_strided_slice %68 {offsets = [2, 0], sizes = [1, 128], strides = [1, 1]} : vector<8x128xf32> to vector<1x128xf32>
    %100 = vector.extract_strided_slice %68 {offsets = [5, 0], sizes = [1, 128], strides = [1, 1]} : vector<8x128xf32> to vector<1x128xf32>
    %101 = arith.select %87, %99, %100 : vector<1x128xi1>, vector<1x128xf32>
    %c2_82 = arith.constant 2 : index
    %c0_83 = arith.constant 0 : index
    %102 = vector.load %arg12[%c2_82, %c0_83] : memref<8x128xf32, #tpu.memory_space<vmem>>, vector<1x128xf32>
    tpu.vector_store %arg12[%c2_82, %c0_83], %101 {strides = array<i32>} : memref<8x128xf32, #tpu.memory_space<vmem>>, vector<1x128xf32>,
    %103 = vector.extract_strided_slice %68 {offsets = [3, 0], sizes = [1, 128], strides = [1, 1]} : vector<8x128xf32> to vector<1x128xf32>
    %104 = vector.extract_strided_slice %68 {offsets = [4, 0], sizes = [1, 128], strides = [1, 1]} : vector<8x128xf32> to vector<1x128xf32>
    %105 = arith.select %87, %103, %104 : vector<1x128xi1>, vector<1x128xf32>
    %c3_84 = arith.constant 3 : index
    %c0_85 = arith.constant 0 : index
    %106 = vector.load %arg12[%c3_84, %c0_85] : memref<8x128xf32, #tpu.memory_space<vmem>>, vector<1x128xf32>
    tpu.vector_store %arg12[%c3_84, %c0_85], %105 {strides = array<i32>} : memref<8x128xf32, #tpu.memory_space<vmem>>, vector<1x128xf32>,
    %107 = vector.extract_strided_slice %68 {offsets = [4, 0], sizes = [1, 128], strides = [1, 1]} : vector<8x128xf32> to vector<1x128xf32>
    %108 = vector.extract_strided_slice %68 {offsets = [3, 0], sizes = [1, 128], strides = [1, 1]} : vector<8x128xf32> to vector<1x128xf32>
    %109 = arith.select %87, %107, %108 : vector<1x128xi1>, vector<1x128xf32>
    %c4_86 = arith.constant 4 : index
    %c0_87 = arith.constant 0 : index
    %110 = vector.load %arg12[%c4_86, %c0_87] : memref<8x128xf32, #tpu.memory_space<vmem>>, vector<1x128xf32>
    tpu.vector_store %arg12[%c4_86, %c0_87], %109 {strides = array<i32>} : memref<8x128xf32, #tpu.memory_space<vmem>>, vector<1x128xf32>,
    %111 = vector.extract_strided_slice %68 {offsets = [5, 0], sizes = [1, 128], strides = [1, 1]} : vector<8x128xf32> to vector<1x128xf32>
    %112 = vector.extract_strided_slice %68 {offsets = [2, 0], sizes = [1, 128], strides = [1, 1]} : vector<8x128xf32> to vector<1x128xf32>
    %113 = arith.select %87, %111, %112 : vector<1x128xi1>, vector<1x128xf32>
    %c5 = arith.constant 5 : index
    %c0_88 = arith.constant 0 : index
    %114 = vector.load %arg12[%c5, %c0_88] : memref<8x128xf32, #tpu.memory_space<vmem>>, vector<1x128xf32>
    tpu.vector_store %arg12[%c5, %c0_88], %113 {strides = array<i32>} : memref<8x128xf32, #tpu.memory_space<vmem>>, vector<1x128xf32>,
    %115 = vector.extract_strided_slice %68 {offsets = [6, 0], sizes = [1, 128], strides = [1, 1]} : vector<8x128xf32> to vector<1x128xf32>
    %116 = vector.extract_strided_slice %68 {offsets = [1, 0], sizes = [1, 128], strides = [1, 1]} : vector<8x128xf32> to vector<1x128xf32>
    %117 = arith.select %87, %115, %116 : vector<1x128xi1>, vector<1x128xf32>
    %c6 = arith.constant 6 : index
    %c0_89 = arith.constant 0 : index
    %118 = vector.load %arg12[%c6, %c0_89] : memref<8x128xf32, #tpu.memory_space<vmem>>, vector<1x128xf32>
    tpu.vector_store %arg12[%c6, %c0_89], %117 {strides = array<i32>} : memref<8x128xf32, #tpu.memory_space<vmem>>, vector<1x128xf32>,
    %119 = vector.extract_strided_slice %68 {offsets = [7, 0], sizes = [1, 128], strides = [1, 1]} : vector<8x128xf32> to vector<1x128xf32>
    %120 = vector.extract_strided_slice %68 {offsets = [0, 0], sizes = [1, 128], strides = [1, 1]} : vector<8x128xf32> to vector<1x128xf32>
    %121 = arith.select %87, %119, %120 : vector<1x128xi1>, vector<1x128xf32>
    %c7 = arith.constant 7 : index
    %c0_90 = arith.constant 0 : index
    %122 = vector.load %arg12[%c7, %c0_90] : memref<8x128xf32, #tpu.memory_space<vmem>>, vector<1x128xf32>
    tpu.vector_store %arg12[%c7, %c0_90], %121 {strides = array<i32>} : memref<8x128xf32, #tpu.memory_space<vmem>>, vector<1x128xf32>,
    %c0_91 = arith.constant 0 : index
    %c0_92 = arith.constant 0 : index
    %123 = vector.load %arg9[%c0_91, %c0_92] : memref<32x128xf32, #tpu.memory_space<vmem>>, vector<32x128xf32>
    %124 = arith.index_cast %arg0 : i32 to index
    %125 = memref.load %arg1[%124] : memref<2xi32, #tpu.memory_space<smem>>
    %cst_93 = arith.constant 0.000000e+00 : f32
    %126 = vector.broadcast %cst_93 : f32 to vector<1x32xf32>
    %cst_94 = arith.constant 0.000000e+00 : f32
    %127 = vector.broadcast %cst_94 : f32 to vector<1x32xf32>
    %c0_95 = arith.constant 0 : index
    %c0_96 = arith.constant 0 : index
    %128 = vector.load %arg12[%c0_95, %c0_96] : memref<8x128xf32, #tpu.memory_space<vmem>>, vector<1x128xf32>
    %cst_97 = arith.constant dense<0.000000e+00> : vector<1x128xf32>
    %129 = tpu.matmul %126, %123, %cst_97 {dimension_numbers = #tpu.dot_dimension_numbers<[1], [0], [0], [1], [0, 0, 1, 1], [], []>} : vector<1x32xf32>, vector<32x128xf32>, vector<1x128xf32> -> vector<1x128xf32>
    %130 = arith.addf %128, %129 : vector<1x128xf32>
    %131 = vector.extract_strided_slice %130 {offsets = [0, 0], sizes = [1, 96], strides = [1, 1]} : vector<1x128xf32> to vector<1x96xf32>
    %132 = arith.negf %131 : vector<1x96xf32>
    %133 = math.exp %132 : vector<1x96xf32>
    %cst_98 = arith.constant 1.000000e+00 : f32
    %134 = vector.broadcast %cst_98 : f32 to vector<1x96xf32>
    %135 = arith.addf %134, %133 : vector<1x96xf32>
    %136 = arith.divf %134, %135 : vector<1x96xf32>
    %137 = vector.extract_strided_slice %136 {offsets = [0, 0], sizes = [1, 32], strides = [1, 1]} : vector<1x96xf32> to vector<1x32xf32>
    %138 = vector.extract_strided_slice %136 {offsets = [0, 32], sizes = [1, 32], strides = [1, 1]} : vector<1x96xf32> to vector<1x32xf32>
    %139 = vector.extract_strided_slice %136 {offsets = [0, 64], sizes = [1, 32], strides = [1, 1]} : vector<1x96xf32> to vector<1x32xf32>
    %140 = vector.extract_strided_slice %130 {offsets = [0, 96], sizes = [1, 32], strides = [1, 1]} : vector<1x128xf32> to vector<1x32xf32>
    %141 = math.tanh %140 : vector<1x32xf32>
    %142 = arith.mulf %138, %127 : vector<1x32xf32>
    %143 = arith.mulf %137, %141 : vector<1x32xf32>
    %144 = arith.addf %142, %143 : vector<1x32xf32>
    %145 = math.tanh %144 : vector<1x32xf32>
    %146 = arith.mulf %139, %145 : vector<1x32xf32>
    %c0_i32_99 = arith.constant 0 : i32
    %c7_i32 = arith.constant 7 : i32
    %147 = vector.broadcast %c0_i32_99 : i32 to vector<1x32xi32>
    %148 = vector.broadcast %c7_i32 : i32 to vector<1x32xi32>
    %149 = arith.select %90, %147, %148 : vector<1x32xi1>, vector<1x32xi32>
    %150 = vector.broadcast %125 : i32 to vector<1x32xi32>
    %151 = arith.cmpi slt, %149, %150 : vector<1x32xi32>
    %cst_100 = arith.constant 0.000000e+00 : f32
    %152 = vector.broadcast %cst_100 : f32 to vector<1x32xf32>
    %153 = arith.select %151, %146, %152 : vector<1x32xi1>, vector<1x32xf32>
    %154 = vector.extract_strided_slice %153 {offsets = [0, 0], sizes = [1, 16], strides = [1, 1]} : vector<1x32xf32> to vector<1x16xf32>
    %155 = vector.shape_cast %154 : vector<1x16xf32> to vector<1x1x16xf32>
    %c0_101 = arith.constant 0 : index
    %c0_102 = arith.constant 0 : index
    %c0_103 = arith.constant 0 : index
    %156 = vector.load %arg10[%c0_101, %c0_102, %c0_103] : memref<1x8x32xf32, #tpu.memory_space<vmem>>, vector<1x1x16xf32>
    tpu.vector_store %arg10[%c0_101, %c0_102, %c0_103], %155 {strides = array<i32>} : memref<1x8x32xf32, #tpu.memory_space<vmem>>, vector<1x1x16xf32>,
    %157 = vector.extract_strided_slice %153 {offsets = [0, 16], sizes = [1, 16], strides = [1, 1]} : vector<1x32xf32> to vector<1x16xf32>
    %158 = vector.shape_cast %157 : vector<1x16xf32> to vector<1x1x16xf32>
    %c0_104 = arith.constant 0 : index
    %c7_105 = arith.constant 7 : index
    %c16 = arith.constant 16 : index
    %159 = vector.load %arg10[%c0_104, %c7_105, %c16] : memref<1x8x32xf32, #tpu.memory_space<vmem>>, vector<1x1x16xf32>
    tpu.vector_store %arg10[%c0_104, %c7_105, %c16], %158 {strides = array<i32>} : memref<1x8x32xf32, #tpu.memory_space<vmem>>, vector<1x1x16xf32>,
    %160 = arith.select %151, %146, %126 : vector<1x32xi1>, vector<1x32xf32>
    %161 = arith.select %151, %144, %127 : vector<1x32xi1>, vector<1x32xf32>
    %c1_106 = arith.constant 1 : index
    %c0_107 = arith.constant 0 : index
    %162 = vector.load %arg12[%c1_106, %c0_107] : memref<8x128xf32, #tpu.memory_space<vmem>>, vector<1x128xf32>
    %cst_108 = arith.constant dense<0.000000e+00> : vector<1x128xf32>
    %163 = tpu.matmul %160, %123, %cst_108 {dimension_numbers = #tpu.dot_dimension_numbers<[1], [0], [0], [1], [0, 0, 1, 1], [], []>} : vector<1x32xf32>, vector<32x128xf32>, vector<1x128xf32> -> vector<1x128xf32>
    %164 = arith.addf %162, %163 : vector<1x128xf32>
    %165 = vector.extract_strided_slice %164 {offsets = [0, 0], sizes = [1, 96], strides = [1, 1]} : vector<1x128xf32> to vector<1x96xf32>
    %166 = arith.negf %165 : vector<1x96xf32>
    %167 = math.exp %166 : vector<1x96xf32>
    %cst_109 = arith.constant 1.000000e+00 : f32
    %168 = vector.broadcast %cst_109 : f32 to vector<1x96xf32>
    %169 = arith.addf %168, %167 : vector<1x96xf32>
    %170 = arith.divf %168, %169 : vector<1x96xf32>
    %171 = vector.extract_strided_slice %170 {offsets = [0, 0], sizes = [1, 32], strides = [1, 1]} : vector<1x96xf32> to vector<1x32xf32>
    %172 = vector.extract_strided_slice %170 {offsets = [0, 32], sizes = [1, 32], strides = [1, 1]} : vector<1x96xf32> to vector<1x32xf32>
    %173 = vector.extract_strided_slice %170 {offsets = [0, 64], sizes = [1, 32], strides = [1, 1]} : vector<1x96xf32> to vector<1x32xf32>
    %174 = vector.extract_strided_slice %164 {offsets = [0, 96], sizes = [1, 32], strides = [1, 1]} : vector<1x128xf32> to vector<1x32xf32>
    %175 = math.tanh %174 : vector<1x32xf32>
    %176 = arith.mulf %172, %161 : vector<1x32xf32>
    %177 = arith.mulf %171, %175 : vector<1x32xf32>
    %178 = arith.addf %176, %177 : vector<1x32xf32>
    %179 = math.tanh %178 : vector<1x32xf32>
    %180 = arith.mulf %173, %179 : vector<1x32xf32>
    %c1_i32_110 = arith.constant 1 : i32
    %c6_i32 = arith.constant 6 : i32
    %181 = vector.broadcast %c1_i32_110 : i32 to vector<1x32xi32>
    %182 = vector.broadcast %c6_i32 : i32 to vector<1x32xi32>
    %183 = arith.select %90, %181, %182 : vector<1x32xi1>, vector<1x32xi32>
    %184 = vector.broadcast %125 : i32 to vector<1x32xi32>
    %185 = arith.cmpi slt, %183, %184 : vector<1x32xi32>
    %cst_111 = arith.constant 0.000000e+00 : f32
    %186 = vector.broadcast %cst_111 : f32 to vector<1x32xf32>
    %187 = arith.select %185, %180, %186 : vector<1x32xi1>, vector<1x32xf32>
    %188 = vector.extract_strided_slice %187 {offsets = [0, 0], sizes = [1, 16], strides = [1, 1]} : vector<1x32xf32> to vector<1x16xf32>
    %189 = vector.shape_cast %188 : vector<1x16xf32> to vector<1x1x16xf32>
    %c0_112 = arith.constant 0 : index
    %c1_113 = arith.constant 1 : index
    %c0_114 = arith.constant 0 : index
    %190 = vector.load %arg10[%c0_112, %c1_113, %c0_114] : memref<1x8x32xf32, #tpu.memory_space<vmem>>, vector<1x1x16xf32>
    tpu.vector_store %arg10[%c0_112, %c1_113, %c0_114], %189 {strides = array<i32>} : memref<1x8x32xf32, #tpu.memory_space<vmem>>, vector<1x1x16xf32>,
    %191 = vector.extract_strided_slice %187 {offsets = [0, 16], sizes = [1, 16], strides = [1, 1]} : vector<1x32xf32> to vector<1x16xf32>
    %192 = vector.shape_cast %191 : vector<1x16xf32> to vector<1x1x16xf32>
    %c0_115 = arith.constant 0 : index
    %c6_116 = arith.constant 6 : index
    %c16_117 = arith.constant 16 : index
    %193 = vector.load %arg10[%c0_115, %c6_116, %c16_117] : memref<1x8x32xf32, #tpu.memory_space<vmem>>, vector<1x1x16xf32>
    tpu.vector_store %arg10[%c0_115, %c6_116, %c16_117], %192 {strides = array<i32>} : memref<1x8x32xf32, #tpu.memory_space<vmem>>, vector<1x1x16xf32>,
    %194 = arith.select %185, %180, %160 : vector<1x32xi1>, vector<1x32xf32>
    %195 = arith.select %185, %178, %161 : vector<1x32xi1>, vector<1x32xf32>
    %c2_118 = arith.constant 2 : index
    %c0_119 = arith.constant 0 : index
    %196 = vector.load %arg12[%c2_118, %c0_119] : memref<8x128xf32, #tpu.memory_space<vmem>>, vector<1x128xf32>
    %cst_120 = arith.constant dense<0.000000e+00> : vector<1x128xf32>
    %197 = tpu.matmul %194, %123, %cst_120 {dimension_numbers = #tpu.dot_dimension_numbers<[1], [0], [0], [1], [0, 0, 1, 1], [], []>} : vector<1x32xf32>, vector<32x128xf32>, vector<1x128xf32> -> vector<1x128xf32>
    %198 = arith.addf %196, %197 : vector<1x128xf32>
    %199 = vector.extract_strided_slice %198 {offsets = [0, 0], sizes = [1, 96], strides = [1, 1]} : vector<1x128xf32> to vector<1x96xf32>
    %200 = arith.negf %199 : vector<1x96xf32>
    %201 = math.exp %200 : vector<1x96xf32>
    %cst_121 = arith.constant 1.000000e+00 : f32
    %202 = vector.broadcast %cst_121 : f32 to vector<1x96xf32>
    %203 = arith.addf %202, %201 : vector<1x96xf32>
    %204 = arith.divf %202, %203 : vector<1x96xf32>
    %205 = vector.extract_strided_slice %204 {offsets = [0, 0], sizes = [1, 32], strides = [1, 1]} : vector<1x96xf32> to vector<1x32xf32>
    %206 = vector.extract_strided_slice %204 {offsets = [0, 32], sizes = [1, 32], strides = [1, 1]} : vector<1x96xf32> to vector<1x32xf32>
    %207 = vector.extract_strided_slice %204 {offsets = [0, 64], sizes = [1, 32], strides = [1, 1]} : vector<1x96xf32> to vector<1x32xf32>
    %208 = vector.extract_strided_slice %198 {offsets = [0, 96], sizes = [1, 32], strides = [1, 1]} : vector<1x128xf32> to vector<1x32xf32>
    %209 = math.tanh %208 : vector<1x32xf32>
    %210 = arith.mulf %206, %195 : vector<1x32xf32>
    %211 = arith.mulf %205, %209 : vector<1x32xf32>
    %212 = arith.addf %210, %211 : vector<1x32xf32>
    %213 = math.tanh %212 : vector<1x32xf32>
    %214 = arith.mulf %207, %213 : vector<1x32xf32>
    %c2_i32 = arith.constant 2 : i32
    %c5_i32 = arith.constant 5 : i32
    %215 = vector.broadcast %c2_i32 : i32 to vector<1x32xi32>
    %216 = vector.broadcast %c5_i32 : i32 to vector<1x32xi32>
    %217 = arith.select %90, %215, %216 : vector<1x32xi1>, vector<1x32xi32>
    %218 = vector.broadcast %125 : i32 to vector<1x32xi32>
    %219 = arith.cmpi slt, %217, %218 : vector<1x32xi32>
    %cst_122 = arith.constant 0.000000e+00 : f32
    %220 = vector.broadcast %cst_122 : f32 to vector<1x32xf32>
    %221 = arith.select %219, %214, %220 : vector<1x32xi1>, vector<1x32xf32>
    %222 = vector.extract_strided_slice %221 {offsets = [0, 0], sizes = [1, 16], strides = [1, 1]} : vector<1x32xf32> to vector<1x16xf32>
    %223 = vector.shape_cast %222 : vector<1x16xf32> to vector<1x1x16xf32>
    %c0_123 = arith.constant 0 : index
    %c2_124 = arith.constant 2 : index
    %c0_125 = arith.constant 0 : index
    %224 = vector.load %arg10[%c0_123, %c2_124, %c0_125] : memref<1x8x32xf32, #tpu.memory_space<vmem>>, vector<1x1x16xf32>
    tpu.vector_store %arg10[%c0_123, %c2_124, %c0_125], %223 {strides = array<i32>} : memref<1x8x32xf32, #tpu.memory_space<vmem>>, vector<1x1x16xf32>,
    %225 = vector.extract_strided_slice %221 {offsets = [0, 16], sizes = [1, 16], strides = [1, 1]} : vector<1x32xf32> to vector<1x16xf32>
    %226 = vector.shape_cast %225 : vector<1x16xf32> to vector<1x1x16xf32>
    %c0_126 = arith.constant 0 : index
    %c5_127 = arith.constant 5 : index
    %c16_128 = arith.constant 16 : index
    %227 = vector.load %arg10[%c0_126, %c5_127, %c16_128] : memref<1x8x32xf32, #tpu.memory_space<vmem>>, vector<1x1x16xf32>
    tpu.vector_store %arg10[%c0_126, %c5_127, %c16_128], %226 {strides = array<i32>} : memref<1x8x32xf32, #tpu.memory_space<vmem>>, vector<1x1x16xf32>,
    %228 = arith.select %219, %214, %194 : vector<1x32xi1>, vector<1x32xf32>
    %229 = arith.select %219, %212, %195 : vector<1x32xi1>, vector<1x32xf32>
    %c3_129 = arith.constant 3 : index
    %c0_130 = arith.constant 0 : index
    %230 = vector.load %arg12[%c3_129, %c0_130] : memref<8x128xf32, #tpu.memory_space<vmem>>, vector<1x128xf32>
    %cst_131 = arith.constant dense<0.000000e+00> : vector<1x128xf32>
    %231 = tpu.matmul %228, %123, %cst_131 {dimension_numbers = #tpu.dot_dimension_numbers<[1], [0], [0], [1], [0, 0, 1, 1], [], []>} : vector<1x32xf32>, vector<32x128xf32>, vector<1x128xf32> -> vector<1x128xf32>
    %232 = arith.addf %230, %231 : vector<1x128xf32>
    %233 = vector.extract_strided_slice %232 {offsets = [0, 0], sizes = [1, 96], strides = [1, 1]} : vector<1x128xf32> to vector<1x96xf32>
    %234 = arith.negf %233 : vector<1x96xf32>
    %235 = math.exp %234 : vector<1x96xf32>
    %cst_132 = arith.constant 1.000000e+00 : f32
    %236 = vector.broadcast %cst_132 : f32 to vector<1x96xf32>
    %237 = arith.addf %236, %235 : vector<1x96xf32>
    %238 = arith.divf %236, %237 : vector<1x96xf32>
    %239 = vector.extract_strided_slice %238 {offsets = [0, 0], sizes = [1, 32], strides = [1, 1]} : vector<1x96xf32> to vector<1x32xf32>
    %240 = vector.extract_strided_slice %238 {offsets = [0, 32], sizes = [1, 32], strides = [1, 1]} : vector<1x96xf32> to vector<1x32xf32>
    %241 = vector.extract_strided_slice %238 {offsets = [0, 64], sizes = [1, 32], strides = [1, 1]} : vector<1x96xf32> to vector<1x32xf32>
    %242 = vector.extract_strided_slice %232 {offsets = [0, 96], sizes = [1, 32], strides = [1, 1]} : vector<1x128xf32> to vector<1x32xf32>
    %243 = math.tanh %242 : vector<1x32xf32>
    %244 = arith.mulf %240, %229 : vector<1x32xf32>
    %245 = arith.mulf %239, %243 : vector<1x32xf32>
    %246 = arith.addf %244, %245 : vector<1x32xf32>
    %247 = math.tanh %246 : vector<1x32xf32>
    %248 = arith.mulf %241, %247 : vector<1x32xf32>
    %c3_i32 = arith.constant 3 : i32
    %c4_i32 = arith.constant 4 : i32
    %249 = vector.broadcast %c3_i32 : i32 to vector<1x32xi32>
    %250 = vector.broadcast %c4_i32 : i32 to vector<1x32xi32>
    %251 = arith.select %90, %249, %250 : vector<1x32xi1>, vector<1x32xi32>
    %252 = vector.broadcast %125 : i32 to vector<1x32xi32>
    %253 = arith.cmpi slt, %251, %252 : vector<1x32xi32>
    %cst_133 = arith.constant 0.000000e+00 : f32
    %254 = vector.broadcast %cst_133 : f32 to vector<1x32xf32>
    %255 = arith.select %253, %248, %254 : vector<1x32xi1>, vector<1x32xf32>
    %256 = vector.extract_strided_slice %255 {offsets = [0, 0], sizes = [1, 16], strides = [1, 1]} : vector<1x32xf32> to vector<1x16xf32>
    %257 = vector.shape_cast %256 : vector<1x16xf32> to vector<1x1x16xf32>
    %c0_134 = arith.constant 0 : index
    %c3_135 = arith.constant 3 : index
    %c0_136 = arith.constant 0 : index
    %258 = vector.load %arg10[%c0_134, %c3_135, %c0_136] : memref<1x8x32xf32, #tpu.memory_space<vmem>>, vector<1x1x16xf32>
    tpu.vector_store %arg10[%c0_134, %c3_135, %c0_136], %257 {strides = array<i32>} : memref<1x8x32xf32, #tpu.memory_space<vmem>>, vector<1x1x16xf32>,
    %259 = vector.extract_strided_slice %255 {offsets = [0, 16], sizes = [1, 16], strides = [1, 1]} : vector<1x32xf32> to vector<1x16xf32>
    %260 = vector.shape_cast %259 : vector<1x16xf32> to vector<1x1x16xf32>
    %c0_137 = arith.constant 0 : index
    %c4_138 = arith.constant 4 : index
    %c16_139 = arith.constant 16 : index
    %261 = vector.load %arg10[%c0_137, %c4_138, %c16_139] : memref<1x8x32xf32, #tpu.memory_space<vmem>>, vector<1x1x16xf32>
    tpu.vector_store %arg10[%c0_137, %c4_138, %c16_139], %260 {strides = array<i32>} : memref<1x8x32xf32, #tpu.memory_space<vmem>>, vector<1x1x16xf32>,
    %262 = arith.select %253, %248, %228 : vector<1x32xi1>, vector<1x32xf32>
    %263 = arith.select %253, %246, %229 : vector<1x32xi1>, vector<1x32xf32>
    %c4_140 = arith.constant 4 : index
    %c0_141 = arith.constant 0 : index
    %264 = vector.load %arg12[%c4_140, %c0_141] : memref<8x128xf32, #tpu.memory_space<vmem>>, vector<1x128xf32>
    %cst_142 = arith.constant dense<0.000000e+00> : vector<1x128xf32>
    %265 = tpu.matmul %262, %123, %cst_142 {dimension_numbers = #tpu.dot_dimension_numbers<[1], [0], [0], [1], [0, 0, 1, 1], [], []>} : vector<1x32xf32>, vector<32x128xf32>, vector<1x128xf32> -> vector<1x128xf32>
    %266 = arith.addf %264, %265 : vector<1x128xf32>
    %267 = vector.extract_strided_slice %266 {offsets = [0, 0], sizes = [1, 96], strides = [1, 1]} : vector<1x128xf32> to vector<1x96xf32>
    %268 = arith.negf %267 : vector<1x96xf32>
    %269 = math.exp %268 : vector<1x96xf32>
    %cst_143 = arith.constant 1.000000e+00 : f32
    %270 = vector.broadcast %cst_143 : f32 to vector<1x96xf32>
    %271 = arith.addf %270, %269 : vector<1x96xf32>
    %272 = arith.divf %270, %271 : vector<1x96xf32>
    %273 = vector.extract_strided_slice %272 {offsets = [0, 0], sizes = [1, 32], strides = [1, 1]} : vector<1x96xf32> to vector<1x32xf32>
    %274 = vector.extract_strided_slice %272 {offsets = [0, 32], sizes = [1, 32], strides = [1, 1]} : vector<1x96xf32> to vector<1x32xf32>
    %275 = vector.extract_strided_slice %272 {offsets = [0, 64], sizes = [1, 32], strides = [1, 1]} : vector<1x96xf32> to vector<1x32xf32>
    %276 = vector.extract_strided_slice %266 {offsets = [0, 96], sizes = [1, 32], strides = [1, 1]} : vector<1x128xf32> to vector<1x32xf32>
    %277 = math.tanh %276 : vector<1x32xf32>
    %278 = arith.mulf %274, %263 : vector<1x32xf32>
    %279 = arith.mulf %273, %277 : vector<1x32xf32>
    %280 = arith.addf %278, %279 : vector<1x32xf32>
    %281 = math.tanh %280 : vector<1x32xf32>
    %282 = arith.mulf %275, %281 : vector<1x32xf32>
    %c4_i32_144 = arith.constant 4 : i32
    %c3_i32_145 = arith.constant 3 : i32
    %283 = vector.broadcast %c4_i32_144 : i32 to vector<1x32xi32>
    %284 = vector.broadcast %c3_i32_145 : i32 to vector<1x32xi32>
    %285 = arith.select %90, %283, %284 : vector<1x32xi1>, vector<1x32xi32>
    %286 = vector.broadcast %125 : i32 to vector<1x32xi32>
    %287 = arith.cmpi slt, %285, %286 : vector<1x32xi32>
    %cst_146 = arith.constant 0.000000e+00 : f32
    %288 = vector.broadcast %cst_146 : f32 to vector<1x32xf32>
    %289 = arith.select %287, %282, %288 : vector<1x32xi1>, vector<1x32xf32>
    %290 = vector.extract_strided_slice %289 {offsets = [0, 0], sizes = [1, 16], strides = [1, 1]} : vector<1x32xf32> to vector<1x16xf32>
    %291 = vector.shape_cast %290 : vector<1x16xf32> to vector<1x1x16xf32>
    %c0_147 = arith.constant 0 : index
    %c4_148 = arith.constant 4 : index
    %c0_149 = arith.constant 0 : index
    %292 = vector.load %arg10[%c0_147, %c4_148, %c0_149] : memref<1x8x32xf32, #tpu.memory_space<vmem>>, vector<1x1x16xf32>
    tpu.vector_store %arg10[%c0_147, %c4_148, %c0_149], %291 {strides = array<i32>} : memref<1x8x32xf32, #tpu.memory_space<vmem>>, vector<1x1x16xf32>,
    %293 = vector.extract_strided_slice %289 {offsets = [0, 16], sizes = [1, 16], strides = [1, 1]} : vector<1x32xf32> to vector<1x16xf32>
    %294 = vector.shape_cast %293 : vector<1x16xf32> to vector<1x1x16xf32>
    %c0_150 = arith.constant 0 : index
    %c3_151 = arith.constant 3 : index
    %c16_152 = arith.constant 16 : index
    %295 = vector.load %arg10[%c0_150, %c3_151, %c16_152] : memref<1x8x32xf32, #tpu.memory_space<vmem>>, vector<1x1x16xf32>
    tpu.vector_store %arg10[%c0_150, %c3_151, %c16_152], %294 {strides = array<i32>} : memref<1x8x32xf32, #tpu.memory_space<vmem>>, vector<1x1x16xf32>,
    %296 = arith.select %287, %282, %262 : vector<1x32xi1>, vector<1x32xf32>
    %297 = arith.select %287, %280, %263 : vector<1x32xi1>, vector<1x32xf32>
    %c5_153 = arith.constant 5 : index
    %c0_154 = arith.constant 0 : index
    %298 = vector.load %arg12[%c5_153, %c0_154] : memref<8x128xf32, #tpu.memory_space<vmem>>, vector<1x128xf32>
    %cst_155 = arith.constant dense<0.000000e+00> : vector<1x128xf32>
    %299 = tpu.matmul %296, %123, %cst_155 {dimension_numbers = #tpu.dot_dimension_numbers<[1], [0], [0], [1], [0, 0, 1, 1], [], []>} : vector<1x32xf32>, vector<32x128xf32>, vector<1x128xf32> -> vector<1x128xf32>
    %300 = arith.addf %298, %299 : vector<1x128xf32>
    %301 = vector.extract_strided_slice %300 {offsets = [0, 0], sizes = [1, 96], strides = [1, 1]} : vector<1x128xf32> to vector<1x96xf32>
    %302 = arith.negf %301 : vector<1x96xf32>
    %303 = math.exp %302 : vector<1x96xf32>
    %cst_156 = arith.constant 1.000000e+00 : f32
    %304 = vector.broadcast %cst_156 : f32 to vector<1x96xf32>
    %305 = arith.addf %304, %303 : vector<1x96xf32>
    %306 = arith.divf %304, %305 : vector<1x96xf32>
    %307 = vector.extract_strided_slice %306 {offsets = [0, 0], sizes = [1, 32], strides = [1, 1]} : vector<1x96xf32> to vector<1x32xf32>
    %308 = vector.extract_strided_slice %306 {offsets = [0, 32], sizes = [1, 32], strides = [1, 1]} : vector<1x96xf32> to vector<1x32xf32>
    %309 = vector.extract_strided_slice %306 {offsets = [0, 64], sizes = [1, 32], strides = [1, 1]} : vector<1x96xf32> to vector<1x32xf32>
    %310 = vector.extract_strided_slice %300 {offsets = [0, 96], sizes = [1, 32], strides = [1, 1]} : vector<1x128xf32> to vector<1x32xf32>
    %311 = math.tanh %310 : vector<1x32xf32>
    %312 = arith.mulf %308, %297 : vector<1x32xf32>
    %313 = arith.mulf %307, %311 : vector<1x32xf32>
    %314 = arith.addf %312, %313 : vector<1x32xf32>
    %315 = math.tanh %314 : vector<1x32xf32>
    %316 = arith.mulf %309, %315 : vector<1x32xf32>
    %c5_i32_157 = arith.constant 5 : i32
    %c2_i32_158 = arith.constant 2 : i32
    %317 = vector.broadcast %c5_i32_157 : i32 to vector<1x32xi32>
    %318 = vector.broadcast %c2_i32_158 : i32 to vector<1x32xi32>
    %319 = arith.select %90, %317, %318 : vector<1x32xi1>, vector<1x32xi32>
    %320 = vector.broadcast %125 : i32 to vector<1x32xi32>
    %321 = arith.cmpi slt, %319, %320 : vector<1x32xi32>
    %cst_159 = arith.constant 0.000000e+00 : f32
    %322 = vector.broadcast %cst_159 : f32 to vector<1x32xf32>
    %323 = arith.select %321, %316, %322 : vector<1x32xi1>, vector<1x32xf32>
    %324 = vector.extract_strided_slice %323 {offsets = [0, 0], sizes = [1, 16], strides = [1, 1]} : vector<1x32xf32> to vector<1x16xf32>
    %325 = vector.shape_cast %324 : vector<1x16xf32> to vector<1x1x16xf32>
    %c0_160 = arith.constant 0 : index
    %c5_161 = arith.constant 5 : index
    %c0_162 = arith.constant 0 : index
    %326 = vector.load %arg10[%c0_160, %c5_161, %c0_162] : memref<1x8x32xf32, #tpu.memory_space<vmem>>, vector<1x1x16xf32>
    tpu.vector_store %arg10[%c0_160, %c5_161, %c0_162], %325 {strides = array<i32>} : memref<1x8x32xf32, #tpu.memory_space<vmem>>, vector<1x1x16xf32>,
    %327 = vector.extract_strided_slice %323 {offsets = [0, 16], sizes = [1, 16], strides = [1, 1]} : vector<1x32xf32> to vector<1x16xf32>
    %328 = vector.shape_cast %327 : vector<1x16xf32> to vector<1x1x16xf32>
    %c0_163 = arith.constant 0 : index
    %c2_164 = arith.constant 2 : index
    %c16_165 = arith.constant 16 : index
    %329 = vector.load %arg10[%c0_163, %c2_164, %c16_165] : memref<1x8x32xf32, #tpu.memory_space<vmem>>, vector<1x1x16xf32>
    tpu.vector_store %arg10[%c0_163, %c2_164, %c16_165], %328 {strides = array<i32>} : memref<1x8x32xf32, #tpu.memory_space<vmem>>, vector<1x1x16xf32>,
    %330 = arith.select %321, %316, %296 : vector<1x32xi1>, vector<1x32xf32>
    %331 = arith.select %321, %314, %297 : vector<1x32xi1>, vector<1x32xf32>
    %c6_166 = arith.constant 6 : index
    %c0_167 = arith.constant 0 : index
    %332 = vector.load %arg12[%c6_166, %c0_167] : memref<8x128xf32, #tpu.memory_space<vmem>>, vector<1x128xf32>
    %cst_168 = arith.constant dense<0.000000e+00> : vector<1x128xf32>
    %333 = tpu.matmul %330, %123, %cst_168 {dimension_numbers = #tpu.dot_dimension_numbers<[1], [0], [0], [1], [0, 0, 1, 1], [], []>} : vector<1x32xf32>, vector<32x128xf32>, vector<1x128xf32> -> vector<1x128xf32>
    %334 = arith.addf %332, %333 : vector<1x128xf32>
    %335 = vector.extract_strided_slice %334 {offsets = [0, 0], sizes = [1, 96], strides = [1, 1]} : vector<1x128xf32> to vector<1x96xf32>
    %336 = arith.negf %335 : vector<1x96xf32>
    %337 = math.exp %336 : vector<1x96xf32>
    %cst_169 = arith.constant 1.000000e+00 : f32
    %338 = vector.broadcast %cst_169 : f32 to vector<1x96xf32>
    %339 = arith.addf %338, %337 : vector<1x96xf32>
    %340 = arith.divf %338, %339 : vector<1x96xf32>
    %341 = vector.extract_strided_slice %340 {offsets = [0, 0], sizes = [1, 32], strides = [1, 1]} : vector<1x96xf32> to vector<1x32xf32>
    %342 = vector.extract_strided_slice %340 {offsets = [0, 32], sizes = [1, 32], strides = [1, 1]} : vector<1x96xf32> to vector<1x32xf32>
    %343 = vector.extract_strided_slice %340 {offsets = [0, 64], sizes = [1, 32], strides = [1, 1]} : vector<1x96xf32> to vector<1x32xf32>
    %344 = vector.extract_strided_slice %334 {offsets = [0, 96], sizes = [1, 32], strides = [1, 1]} : vector<1x128xf32> to vector<1x32xf32>
    %345 = math.tanh %344 : vector<1x32xf32>
    %346 = arith.mulf %342, %331 : vector<1x32xf32>
    %347 = arith.mulf %341, %345 : vector<1x32xf32>
    %348 = arith.addf %346, %347 : vector<1x32xf32>
    %349 = math.tanh %348 : vector<1x32xf32>
    %350 = arith.mulf %343, %349 : vector<1x32xf32>
    %c6_i32_170 = arith.constant 6 : i32
    %c1_i32_171 = arith.constant 1 : i32
    %351 = vector.broadcast %c6_i32_170 : i32 to vector<1x32xi32>
    %352 = vector.broadcast %c1_i32_171 : i32 to vector<1x32xi32>
    %353 = arith.select %90, %351, %352 : vector<1x32xi1>, vector<1x32xi32>
    %354 = vector.broadcast %125 : i32 to vector<1x32xi32>
    %355 = arith.cmpi slt, %353, %354 : vector<1x32xi32>
    %cst_172 = arith.constant 0.000000e+00 : f32
    %356 = vector.broadcast %cst_172 : f32 to vector<1x32xf32>
    %357 = arith.select %355, %350, %356 : vector<1x32xi1>, vector<1x32xf32>
    %358 = vector.extract_strided_slice %357 {offsets = [0, 0], sizes = [1, 16], strides = [1, 1]} : vector<1x32xf32> to vector<1x16xf32>
    %359 = vector.shape_cast %358 : vector<1x16xf32> to vector<1x1x16xf32>
    %c0_173 = arith.constant 0 : index
    %c6_174 = arith.constant 6 : index
    %c0_175 = arith.constant 0 : index
    %360 = vector.load %arg10[%c0_173, %c6_174, %c0_175] : memref<1x8x32xf32, #tpu.memory_space<vmem>>, vector<1x1x16xf32>
    tpu.vector_store %arg10[%c0_173, %c6_174, %c0_175], %359 {strides = array<i32>} : memref<1x8x32xf32, #tpu.memory_space<vmem>>, vector<1x1x16xf32>,
    %361 = vector.extract_strided_slice %357 {offsets = [0, 16], sizes = [1, 16], strides = [1, 1]} : vector<1x32xf32> to vector<1x16xf32>
    %362 = vector.shape_cast %361 : vector<1x16xf32> to vector<1x1x16xf32>
    %c0_176 = arith.constant 0 : index
    %c1_177 = arith.constant 1 : index
    %c16_178 = arith.constant 16 : index
    %363 = vector.load %arg10[%c0_176, %c1_177, %c16_178] : memref<1x8x32xf32, #tpu.memory_space<vmem>>, vector<1x1x16xf32>
    tpu.vector_store %arg10[%c0_176, %c1_177, %c16_178], %362 {strides = array<i32>} : memref<1x8x32xf32, #tpu.memory_space<vmem>>, vector<1x1x16xf32>,
    %364 = arith.select %355, %350, %330 : vector<1x32xi1>, vector<1x32xf32>
    %365 = arith.select %355, %348, %331 : vector<1x32xi1>, vector<1x32xf32>
    %c7_179 = arith.constant 7 : index
    %c0_180 = arith.constant 0 : index
    %366 = vector.load %arg12[%c7_179, %c0_180] : memref<8x128xf32, #tpu.memory_space<vmem>>, vector<1x128xf32>
    %cst_181 = arith.constant dense<0.000000e+00> : vector<1x128xf32>
    %367 = tpu.matmul %364, %123, %cst_181 {dimension_numbers = #tpu.dot_dimension_numbers<[1], [0], [0], [1], [0, 0, 1, 1], [], []>} : vector<1x32xf32>, vector<32x128xf32>, vector<1x128xf32> -> vector<1x128xf32>
    %368 = arith.addf %366, %367 : vector<1x128xf32>
    %369 = vector.extract_strided_slice %368 {offsets = [0, 0], sizes = [1, 96], strides = [1, 1]} : vector<1x128xf32> to vector<1x96xf32>
    %370 = arith.negf %369 : vector<1x96xf32>
    %371 = math.exp %370 : vector<1x96xf32>
    %cst_182 = arith.constant 1.000000e+00 : f32
    %372 = vector.broadcast %cst_182 : f32 to vector<1x96xf32>
    %373 = arith.addf %372, %371 : vector<1x96xf32>
    %374 = arith.divf %372, %373 : vector<1x96xf32>
    %375 = vector.extract_strided_slice %374 {offsets = [0, 0], sizes = [1, 32], strides = [1, 1]} : vector<1x96xf32> to vector<1x32xf32>
    %376 = vector.extract_strided_slice %374 {offsets = [0, 32], sizes = [1, 32], strides = [1, 1]} : vector<1x96xf32> to vector<1x32xf32>
    %377 = vector.extract_strided_slice %374 {offsets = [0, 64], sizes = [1, 32], strides = [1, 1]} : vector<1x96xf32> to vector<1x32xf32>
    %378 = vector.extract_strided_slice %368 {offsets = [0, 96], sizes = [1, 32], strides = [1, 1]} : vector<1x128xf32> to vector<1x32xf32>
    %379 = math.tanh %378 : vector<1x32xf32>
    %380 = arith.mulf %376, %365 : vector<1x32xf32>
    %381 = arith.mulf %375, %379 : vector<1x32xf32>
    %382 = arith.addf %380, %381 : vector<1x32xf32>
    %383 = math.tanh %382 : vector<1x32xf32>
    %384 = arith.mulf %377, %383 : vector<1x32xf32>
    %c7_i32_183 = arith.constant 7 : i32
    %c0_i32_184 = arith.constant 0 : i32
    %385 = vector.broadcast %c7_i32_183 : i32 to vector<1x32xi32>
    %386 = vector.broadcast %c0_i32_184 : i32 to vector<1x32xi32>
    %387 = arith.select %90, %385, %386 : vector<1x32xi1>, vector<1x32xi32>
    %388 = vector.broadcast %125 : i32 to vector<1x32xi32>
    %389 = arith.cmpi slt, %387, %388 : vector<1x32xi32>
    %cst_185 = arith.constant 0.000000e+00 : f32
    %390 = vector.broadcast %cst_185 : f32 to vector<1x32xf32>
    %391 = arith.select %389, %384, %390 : vector<1x32xi1>, vector<1x32xf32>
    %392 = vector.extract_strided_slice %391 {offsets = [0, 0], sizes = [1, 16], strides = [1, 1]} : vector<1x32xf32> to vector<1x16xf32>
    %393 = vector.shape_cast %392 : vector<1x16xf32> to vector<1x1x16xf32>
    %c0_186 = arith.constant 0 : index
    %c7_187 = arith.constant 7 : index
    %c0_188 = arith.constant 0 : index
    %394 = vector.load %arg10[%c0_186, %c7_187, %c0_188] : memref<1x8x32xf32, #tpu.memory_space<vmem>>, vector<1x1x16xf32>
    tpu.vector_store %arg10[%c0_186, %c7_187, %c0_188], %393 {strides = array<i32>} : memref<1x8x32xf32, #tpu.memory_space<vmem>>, vector<1x1x16xf32>,
    %395 = vector.extract_strided_slice %391 {offsets = [0, 16], sizes = [1, 16], strides = [1, 1]} : vector<1x32xf32> to vector<1x16xf32>
    %396 = vector.shape_cast %395 : vector<1x16xf32> to vector<1x1x16xf32>
    %c0_189 = arith.constant 0 : index
    %c0_190 = arith.constant 0 : index
    %c16_191 = arith.constant 16 : index
    %397 = vector.load %arg10[%c0_189, %c0_190, %c16_191] : memref<1x8x32xf32, #tpu.memory_space<vmem>>, vector<1x1x16xf32>
    tpu.vector_store %arg10[%c0_189, %c0_190, %c16_191], %396 {strides = array<i32>} : memref<1x8x32xf32, #tpu.memory_space<vmem>>, vector<1x1x16xf32>,
    return
  }
  func.func @transform_0(%arg0: i32, %arg1: memref<2xi32, #tpu.memory_space<smem>>) -> (i32, i32, i32) {
    %c0_i32 = arith.constant 0 : i32
    %c0_i32_0 = arith.constant 0 : i32
    %c0_i32_1 = arith.constant 0 : i32
    return %arg0, %c0_i32, %c0_i32_0 : i32, i32, i32
  }
  func.func @transform_1(%arg0: i32, %arg1: memref<2xi32, #tpu.memory_space<smem>>) -> (i32, i32) {
    %c0_i32 = arith.constant 0 : i32
    %c0_i32_0 = arith.constant 0 : i32
    %c0_i32_1 = arith.constant 0 : i32
    return %c0_i32, %c0_i32_0 : i32, i32
  }
  func.func @transform_2(%arg0: i32, %arg1: memref<2xi32, #tpu.memory_space<smem>>) -> (i32, i32) {
    %c0_i32 = arith.constant 0 : i32
    %c0_i32_0 = arith.constant 0 : i32
    %c0_i32_1 = arith.constant 0 : i32
    return %c0_i32, %c0_i32_0 : i32, i32
  }
  func.func @transform_3(%arg0: i32, %arg1: memref<2xi32, #tpu.memory_space<smem>>) -> (i32, i32, i32) {
    %c0_i32 = arith.constant 0 : i32
    %c0_i32_0 = arith.constant 0 : i32
    %c0_i32_1 = arith.constant 0 : i32
    %c0_i32_2 = arith.constant 0 : i32
    return %c0_i32, %c0_i32_0, %c0_i32_1 : i32, i32, i32
  }
  func.func @transform_4(%arg0: i32, %arg1: memref<2xi32, #tpu.memory_space<smem>>) -> (i32, i32, i32) {
    %c0_i32 = arith.constant 0 : i32
    %c0_i32_0 = arith.constant 0 : i32
    %c0_i32_1 = arith.constant 0 : i32
    %c0_i32_2 = arith.constant 0 : i32
    return %c0_i32, %c0_i32_0, %c0_i32_1 : i32, i32, i32
  }
  func.func @transform_5(%arg0: i32, %arg1: memref<2xi32, #tpu.memory_space<smem>>) -> (i32, i32) {
    %c0_i32 = arith.constant 0 : i32
    %c0_i32_0 = arith.constant 0 : i32
    %c0_i32_1 = arith.constant 0 : i32
    return %c0_i32, %c0_i32_0 : i32, i32
  }
  func.func @transform_6(%arg0: i32, %arg1: memref<2xi32, #tpu.memory_space<smem>>) -> (i32, i32) {
    %c0_i32 = arith.constant 0 : i32
    %c0_i32_0 = arith.constant 0 : i32
    %c0_i32_1 = arith.constant 0 : i32
    return %c0_i32, %c0_i32_0 : i32, i32
  }
  func.func @transform_7(%arg0: i32, %arg1: memref<2xi32, #tpu.memory_space<smem>>) -> (i32, i32) {
    %c0_i32 = arith.constant 0 : i32
    %c0_i32_0 = arith.constant 0 : i32
    %c0_i32_1 = arith.constant 0 : i32
    return %c0_i32, %c0_i32_0 : i32, i32
  }
  func.func @transform_8(%arg0: i32, %arg1: memref<2xi32, #tpu.memory_space<smem>>) -> (i32, i32, i32) {
    %c0_i32 = arith.constant 0 : i32
    %c0_i32_0 = arith.constant 0 : i32
    %c0_i32_1 = arith.constant 0 : i32
    return %arg0, %c0_i32, %c0_i32_0 : i32, i32, i32
  }
}

</mosaic_0001>

<llo_original>
// kernel: tpu_custom_call.1
$region0: #{tpu_custom_call.1}
  #allocation0 [shape = 'u32[]', space=smem, size = 0x4, offset = 0x4, fixed_abs, tag = 'smem constant byte address 0x4 - core index']
  #allocation1 [shape = 'u32[72,128]{1,0:T(1,128)}', space=vmem, size = 0x9000, scoped, tag = 'internal scratch']
  #allocation2 [shape = 'f32[12,32]{1,0:T(8,128)}', space=vmem, size = 0x2000, scoped, tag = 'scratch operand']
  #allocation3 [shape = 'f32[8,128]{1,0:T(8,128)}', space=vmem, size = 0x1000, scoped, tag = 'scratch operand']
  #allocation4 [shape = 's32[1]{0}', space=sflag, size = 0x4, scoped, tag = 'scoped memory for tpu_custom_call.1']
  #allocation5 [shape = 'u8[512]{0}', space=smem, size = 0x200, scoped, tag = 'prefetched SMEM operand 0']
  %s0 = inlined_call_operand.vmem [shape: s32[2], index: 0, kind: input, shape index: {}]
  %s1 = inlined_call_operand.vmem [shape: f32[2,8,16], index: 1, kind: input, shape index: {}]
  %s2 = inlined_call_operand.vmem [shape: bf16[16,32], index: 2, kind: input, shape index: {}]
  %s3 = inlined_call_operand.vmem [shape: f32[1,32], index: 3, kind: input, shape index: {}]
  %s4 = inlined_call_operand.vmem [shape: bf16[3,160,32], index: 4, kind: input, shape index: {}]
  %s5 = inlined_call_operand.vmem [shape: f32[3,1,32], index: 5, kind: input, shape index: {}]
  %s6 = inlined_call_operand.vmem [shape: bf16[32,128], index: 6, kind: input, shape index: {}]
  %s7 = inlined_call_operand.vmem [shape: f32[1,128], index: 7, kind: input, shape index: {}]
  %s8 = inlined_call_operand.vmem [shape: f32[32,128], index: 8, kind: input, shape index: {}]
  %s9 = inlined_call_operand.hbm [shape: f32[2,8,32], index: 9, kind: output, shape index: {}]
  %s10 = sld [smem:[#allocation0]]
  $region65: #{tpu_custom_call.1} parent=0
    _
  %s12 = ssub.s32 1, %s10
  %s13 = scalar_select 0, %s12, %s10
  %s15 = sshll.u32 %s0, 4
  %s16 = int_to_ptr.vmem [resolvable:$true] %s15
  %18 = dma.vmem_to_smem %s16, 16, [#allocation5], [#allocation4]
  %20 = dma.done [#allocation4], 16
  %21 = sfence
  $region1: #{tpu_custom_call.1} parent=0
    #allocation6 [shape = 'u8[8192]{0}', space=vmem, size = 0x2000, scoped, tag = 'output window, operand 0']
    #allocation7 [shape = 's32[2]{0}', space=sflag, size = 0x8, scoped, tag = 'scoped memory for tpu_custom_call.1']
    %22 = vsyncpa [#allocation7], 0
    %s23 = scalar_lea.sflag [#allocation7], 1
    %24 = vsyncpa %s23, 0
    loop: start=0, step=1, limit=4
    $region2: #{tpu_custom_call.1} parent=1 // loop_pre_header
      _
    $region3: #{tpu_custom_call.1} parent=1 // loop_header
      %s26 = sphi 0, %s30
      %p27 = scmp.ge.s32.totalorder %s26, 4
      %s36 = sphi 0, %s38
      %s39 = sphi 0, %s36
      %s40 = sphi 0, %s39
      %s56 = sphi 0, %s40
      %s60 = sphi 0, %s60
      %s62 = sphi 0, %s60
      %s63 = sphi 0, %s62
      %s77 = sphi 0, %s63
      %s81 = sphi 0, %s81
      %s83 = sphi 0, %s81
      %s84 = sphi 0, %s83
      %s98 = sphi 0, %s84
      %s102 = sphi 0, %s102
      %s104 = sphi 0, %s102
      %s105 = sphi 0, %s104
      %s119 = sphi 0, %s105
      %s123 = sphi 0, %s123
      %s125 = sphi 0, %s123
      %s126 = sphi 0, %s125
      %s140 = sphi 0, %s126
      %s144 = sphi 0, %s144
      %s146 = sphi 0, %s144
      %s147 = sphi 0, %s146
      %s161 = sphi 0, %s147
      %s165 = sphi 0, %s165
      %s167 = sphi 0, %s165
      %s168 = sphi 0, %s167
      %s182 = sphi 0, %s168
      %s186 = sphi 0, %s186
      %s188 = sphi 0, %s186
      %s189 = sphi 0, %s188
      %s203 = sphi 0, %s189
      %s209 = sphi 0, %s211
      %s212 = sphi 0, %s209
      %s213 = sphi 0, %s212
      %s229 = sphi 0, %s213
    $region4: #{tpu_custom_call.1} parent=1 // loop_header_branch
      %29 = sbr.rel (%p27) target = $region8
    $region5: #{tpu_custom_call.1} parent=1 // loop_body
      %s31 = ssub.s32 %s26, 1
      %s32 = ssub.s32 %s26, 2
      %s33 = sadd.s32 %s26, 1
      %s34 = ssub.s32 %s26, %s33
      %p35 = scmp.eq.s32.totalorder %s34, 0
      %s37 = sadd.s32 %s36, 1
      %s38 = scalar_select %p35, %s36, %s37
      %p41 = pneg %p35
      %p42 = scmp.eq.s32.totalorder %s26, 1
      %p43 = por %p41, %p42
      %p44 = scmp.ne.s32.totalorder %s36, %s39
      %p45 = scmp.eq.s32.totalorder %s26, 0
      %p46 = por %p44, %p45
      %p47 = scmp.ne.s32.totalorder %s36, %s39
      %p48 = scmp.eq.s32.totalorder %s31, 1
      %p49 = por %p47, %p48
      %p50 = scmp.ne.s32.totalorder %s39, %s40
      %p51 = scmp.eq.s32.totalorder %s31, 0
      %p52 = por %p50, %p51
      %p53 = scmp.ne.s32.totalorder %s39, %s40
      %p54 = scmp.eq.s32.totalorder %s32, 1
      %p55 = por %p53, %p54
      %p57 = scmp.ne.s32.totalorder %s40, %s56
      %p58 = scmp.eq.s32.totalorder %s32, 0
      %p59 = por %p57, %p58
      %s61 = sadd.s32 %s60, 1
      %p64 = scmp.eq.s32.totalorder %s26, 1
      %p65 = scmp.ne.s32.totalorder %s60, %s62
      %p66 = scmp.eq.s32.totalorder %s26, 0
      %p67 = por %p65, %p66
      %p68 = scmp.ne.s32.totalorder %s60, %s62
      %p69 = scmp.eq.s32.totalorder %s31, 1
      %p70 = por %p68, %p69
      %p71 = scmp.ne.s32.totalorder %s62, %s63
      %p72 = scmp.eq.s32.totalorder %s31, 0
      %p73 = por %p71, %p72
      %p74 = scmp.ne.s32.totalorder %s62, %s63
      %p75 = scmp.eq.s32.totalorder %s32, 1
      %p76 = por %p74, %p75
      %p78 = scmp.ne.s32.totalorder %s63, %s77
      %p79 = scmp.eq.s32.totalorder %s32, 0
      %p80 = por %p78, %p79
      %s82 = sadd.s32 %s81, 1
      %p85 = scmp.eq.s32.totalorder %s26, 1
      %p86 = scmp.ne.s32.totalorder %s81, %s83
      %p87 = scmp.eq.s32.totalorder %s26, 0
      %p88 = por %p86, %p87
      %p89 = scmp.ne.s32.totalorder %s81, %s83
      %p90 = scmp.eq.s32.totalorder %s31, 1
      %p91 = por %p89, %p90
      %p92 = scmp.ne.s32.totalorder %s83, %s84
      %p93 = scmp.eq.s32.totalorder %s31, 0
      %p94 = por %p92, %p93
      %p95 = scmp.ne.s32.totalorder %s83, %s84
      %p96 = scmp.eq.s32.totalorder %s32, 1
      %p97 = por %p95, %p96
      %p99 = scmp.ne.s32.totalorder %s84, %s98
      %p100 = scmp.eq.s32.totalorder %s32, 0
      %p101 = por %p99, %p100
      %s103 = sadd.s32 %s102, 1
      %p106 = scmp.eq.s32.totalorder %s26, 1
      %p107 = scmp.ne.s32.totalorder %s102, %s104
      %p108 = scmp.eq.s32.totalorder %s26, 0
      %p109 = por %p107, %p108
      %p110 = scmp.ne.s32.totalorder %s102, %s104
      %p111 = scmp.eq.s32.totalorder %s31, 1
      %p112 = por %p110, %p111
      %p113 = scmp.ne.s32.totalorder %s104, %s105
      %p114 = scmp.eq.s32.totalorder %s31, 0
      %p115 = por %p113, %p114
      %p116 = scmp.ne.s32.totalorder %s104, %s105
      %p117 = scmp.eq.s32.totalorder %s32, 1
      %p118 = por %p116, %p117
      %p120 = scmp.ne.s32.totalorder %s105, %s119
      %p121 = scmp.eq.s32.totalorder %s32, 0
      %p122 = por %p120, %p121
      %s124 = sadd.s32 %s123, 1
      %p127 = scmp.eq.s32.totalorder %s26, 1
      %p128 = scmp.ne.s32.totalorder %s123, %s125
      %p129 = scmp.eq.s32.totalorder %s26, 0
      %p130 = por %p128, %p129
      %p131 = scmp.ne.s32.totalorder %s123, %s125
      %p132 = scmp.eq.s32.totalorder %s31, 1
      %p133 = por %p131, %p132
      %p134 = scmp.ne.s32.totalorder %s125, %s126
      %p135 = scmp.eq.s32.totalorder %s31, 0
      %p136 = por %p134, %p135
      %p137 = scmp.ne.s32.totalorder %s125, %s126
      %p138 = scmp.eq.s32.totalorder %s32, 1
      %p139 = por %p137, %p138
      %p141 = scmp.ne.s32.totalorder %s126, %s140
      %p142 = scmp.eq.s32.totalorder %s32, 0
      %p143 = por %p141, %p142
      %s145 = sadd.s32 %s144, 1
      %p148 = scmp.eq.s32.totalorder %s26, 1
      %p149 = scmp.ne.s32.totalorder %s144, %s146
      %p150 = scmp.eq.s32.totalorder %s26, 0
      %p151 = por %p149, %p150
      %p152 = scmp.ne.s32.totalorder %s144, %s146
      %p153 = scmp.eq.s32.totalorder %s31, 1
      %p154 = por %p152, %p153
      %p155 = scmp.ne.s32.totalorder %s146, %s147
      %p156 = scmp.eq.s32.totalorder %s31, 0
      %p157 = por %p155, %p156
      %p158 = scmp.ne.s32.totalorder %s146, %s147
      %p159 = scmp.eq.s32.totalorder %s32, 1
      %p160 = por %p158, %p159
      %p162 = scmp.ne.s32.totalorder %s147, %s161
      %p163 = scmp.eq.s32.totalorder %s32, 0
      %p164 = por %p162, %p163
      %s166 = sadd.s32 %s165, 1
      %p169 = scmp.eq.s32.totalorder %s26, 1
      %p170 = scmp.ne.s32.totalorder %s165, %s167
      %p171 = scmp.eq.s32.totalorder %s26, 0
      %p172 = por %p170, %p171
      %p173 = scmp.ne.s32.totalorder %s165, %s167
      %p174 = scmp.eq.s32.totalorder %s31, 1
      %p175 = por %p173, %p174
      %p176 = scmp.ne.s32.totalorder %s167, %s168
      %p177 = scmp.eq.s32.totalorder %s31, 0
      %p178 = por %p176, %p177
      %p179 = scmp.ne.s32.totalorder %s167, %s168
      %p180 = scmp.eq.s32.totalorder %s32, 1
      %p181 = por %p179, %p180
      %p183 = scmp.ne.s32.totalorder %s168, %s182
      %p184 = scmp.eq.s32.totalorder %s32, 0
      %p185 = por %p183, %p184
      %s187 = sadd.s32 %s186, 1
      %p190 = scmp.eq.s32.totalorder %s26, 1
      %p191 = scmp.ne.s32.totalorder %s186, %s188
      %p192 = scmp.eq.s32.totalorder %s26, 0
      %p193 = por %p191, %p192
      %p194 = scmp.ne.s32.totalorder %s186, %s188
      %p195 = scmp.eq.s32.totalorder %s31, 1
      %p196 = por %p194, %p195
      %p197 = scmp.ne.s32.totalorder %s188, %s189
      %p198 = scmp.eq.s32.totalorder %s31, 0
      %p199 = por %p197, %p198
      %p200 = scmp.ne.s32.totalorder %s188, %s189
      %p201 = scmp.eq.s32.totalorder %s32, 1
      %p202 = por %p200, %p201
      %p204 = scmp.ne.s32.totalorder %s189, %s203
      %p205 = scmp.eq.s32.totalorder %s32, 0
      %p206 = por %p204, %p205
      %s207 = ssub.s32 %s26, %s33
      %p208 = scmp.eq.s32.totalorder %s207, 0
      %s210 = sadd.s32 %s209, 1
      %s211 = scalar_select %p208, %s209, %s210
      %p214 = pneg %p208
      %p215 = scmp.eq.s32.totalorder %s26, 1
      %p216 = por %p214, %p215
      %p217 = scmp.ne.s32.totalorder %s209, %s212
      %p218 = scmp.eq.s32.totalorder %s26, 0
      %p219 = por %p217, %p218
      %p220 = scmp.ne.s32.totalorder %s209, %s212
      %p221 = scmp.eq.s32.totalorder %s31, 1
      %p222 = por %p220, %p221
      %p223 = scmp.ne.s32.totalorder %s212, %s213
      %p224 = scmp.eq.s32.totalorder %s31, 0
      %p225 = por %p223, %p224
      %p226 = scmp.ne.s32.totalorder %s212, %s213
      %p227 = scmp.eq.s32.totalorder %s32, 1
      %p228 = por %p226, %p227
      %p230 = scmp.ne.s32.totalorder %s213, %s229
      %p231 = scmp.eq.s32.totalorder %s32, 0
      %p232 = por %p230, %p231
      %p233 = scmp.le.s32.totalorder 1, %s26
      %p234 = scmp.lt.s32.totalorder %s26, 3
      %p235 = pnand %p233, %p234
      %p236 = pneg %p235
      // Predicated region
      $region9: #{tpu_custom_call.1} parent=5 // pred_check
        _
      $region10: #{tpu_custom_call.1} parent=5 // pred_check_branch
        %238 = sbr.rel (%p235) target = $region12
      $region11: #{tpu_custom_call.1} parent=5 // pred_region
        %s239 = ssub.s32 %s26, 1
        // Predicated region
        $region13: #{tpu_custom_call.1} parent=11 // pred_check
          %p240 = pneg %p73
        $region14: #{tpu_custom_call.1} parent=11 // pred_check_branch
          %242 = sbr.rel (%p240) target = $region16
        $region15: #{tpu_custom_call.1} parent=11 // pred_region
          _
        $region16: #{tpu_custom_call.1} parent=11 // pred_fallthru
          _
        // Predicated region
        $region17: #{tpu_custom_call.1} parent=11 // pred_check
          %p243 = pneg %p94
        $region18: #{tpu_custom_call.1} parent=11 // pred_check_branch
          %245 = sbr.rel (%p243) target = $region20
        $region19: #{tpu_custom_call.1} parent=11 // pred_region
          _
        $region20: #{tpu_custom_call.1} parent=11 // pred_fallthru
          _
        // Predicated region
        $region21: #{tpu_custom_call.1} parent=11 // pred_check
          %p246 = pneg %p115
        $region22: #{tpu_custom_call.1} parent=11 // pred_check_branch
          %248 = sbr.rel (%p246) target = $region24
        $region23: #{tpu_custom_call.1} parent=11 // pred_region
          _
        $region24: #{tpu_custom_call.1} parent=11 // pred_fallthru
          _
        // Predicated region
        $region25: #{tpu_custom_call.1} parent=11 // pred_check
          %p249 = pneg %p136
        $region26: #{tpu_custom_call.1} parent=11 // pred_check_branch
          %251 = sbr.rel (%p249) target = $region28
        $region27: #{tpu_custom_call.1} parent=11 // pred_region
          _
        $region28: #{tpu_custom_call.1} parent=11 // pred_fallthru
          _
        // Predicated region
        $region29: #{tpu_custom_call.1} parent=11 // pred_check
          %p252 = pneg %p157
        $region30: #{tpu_custom_call.1} parent=11 // pred_check_branch
          %254 = sbr.rel (%p252) target = $region32
        $region31: #{tpu_custom_call.1} parent=11 // pred_region
          _
        $region32: #{tpu_custom_call.1} parent=11 // pred_fallthru
          _
        // Predicated region
        $region33: #{tpu_custom_call.1} parent=11 // pred_check
          %p255 = pneg %p178
        $region34: #{tpu_custom_call.1} parent=11 // pred_check_branch
          %257 = sbr.rel (%p255) target = $region36
        $region35: #{tpu_custom_call.1} parent=11 // pred_region
          _
        $region36: #{tpu_custom_call.1} parent=11 // pred_fallthru
          _
        // Predicated region
        $region37: #{tpu_custom_call.1} parent=11 // pred_check
          %p258 = pneg %p199
        $region38: #{tpu_custom_call.1} parent=11 // pred_check_branch
          %260 = sbr.rel (%p258) target = $region40
        $region39: #{tpu_custom_call.1} parent=11 // pred_region
          _
        $region40: #{tpu_custom_call.1} parent=11 // pred_fallthru
          _
      $region12: #{tpu_custom_call.1} parent=5 // pred_fallthru
        _
      %p261 = scmp.lt.s32.totalorder %s26, 2
      // Predicated region
      $region41: #{tpu_custom_call.1} parent=5 // pred_check
        %p262 = pneg %p261
      $region42: #{tpu_custom_call.1} parent=5 // pred_check_branch
        %264 = sbr.rel (%p262) target = $region44
      $region43: #{tpu_custom_call.1} parent=5 // pred_region
        // Predicated region
        $region45: #{tpu_custom_call.1} parent=43 // pred_check
          %p265 = pneg %p46
        $region46: #{tpu_custom_call.1} parent=43 // pred_check_branch
          %267 = sbr.rel (%p265) target = $region48
        $region47: #{tpu_custom_call.1} parent=43 // pred_region
          %p268 = scmp.lt.s32.totalorder %s26, 1
          %s269 = scalar_select %p268, %s26, 1
          %s270 = smul.addr %s269, 8
          %s271 = scalar_lea.vmem %s1, %s270
        $region48: #{tpu_custom_call.1} parent=43 // pred_fallthru
          _
      $region44: #{tpu_custom_call.1} parent=5 // pred_fallthru
        _
      %p272 = scmp.le.s32.totalorder 1, %s26
      %p273 = scmp.lt.s32.totalorder %s26, 3
      %p274 = pnand %p272, %p273
      %p275 = pneg %p274
      // Predicated region
      $region49: #{tpu_custom_call.1} parent=5 // pred_check
        _
      $region50: #{tpu_custom_call.1} parent=5 // pred_check_branch
        %277 = sbr.rel (%p274) target = $region52
      $region51: #{tpu_custom_call.1} parent=5 // pred_region
        %s278 = ssub.s32 %s26, 1
        %p279 = scmp.lt.s32.totalorder %s31, 1
        %s280 = scalar_select %p279, %s31, 1
        %s281 = smul.addr %s280, 8
        %s282 = scalar_lea.vmem %s1, %s281
        %p283 = pneg %p52
        %p284 = pneg %p49
        %p285 = pneg %p73
        %p286 = pneg %p70
        %p287 = pneg %p94
        %p288 = pneg %p91
        %p289 = pneg %p115
        %p290 = pneg %p112
        %p291 = pneg %p136
        %p292 = pneg %p133
        %p293 = pneg %p157
        %p294 = pneg %p154
        %p295 = pneg %p178
        %p296 = pneg %p175
        %p297 = pneg %p199
        %p298 = pneg %p196
        %p299 = pneg %p225
        %p300 = pneg %p222
        %s301 = sand.u32 %s212, 1
        %s302 = scalar_lea.sflag [#allocation7], %s301
        %s303 = sand.u32 %s212, 1
        %s304 = smul.addr %s303, 8
        %s305 = scalar_lea.vmem [#allocation6], %s304
        %p306 = scmp.lt.s32.totalorder %s31, 1
        %s307 = scalar_select %p306, %s31, 1
        %s308 = smul.addr %s307, 8
        %s309 = scalar_lea.vmem %s1, %s308
        %vm311 = vcmask 261120
        %312 = vst.msk [vmem:[#allocation2] sm:$0xff] %vm311, 0.0
        %vm313 = vcmask 257024
        %314 = vst.msk [vmem:[#allocation2 + $0x8] sm:$0xf] %vm313, 0.0
        %v315 = vld [vmem:[%s309] sm:$0xff]
        %v316 = vpack.c.bf16 %v315, %v315
        %v317 = vld [vmem:[%s2] sm:$0xf]
        %v318 = vld [vmem:[%s2 + $0x4] sm:$0xf]
        %v319 = vld [vmem:[%s3] sm:$0x1]
        %v321 = vperm.slane %v319, 0
        %v325 = vunpack.c.l.b16 %v317
        %v326 = vunpack.c.l.b16 %v318
        %v327 = vpack.c.b16 %v326, %v325
        %vm329 = vcmask 130048
        %v331 = vsel %vm329, %v316, 0
        %333 = vmatpush.bf16.msra.mxu0 0
        %334 = vmatpush.bf16.msra.mxu0 0
        %335 = vmatpush.bf16.msra.mxu0 0
        %336 = vmatpush.bf16.msra.mxu0 0
        %337 = vmatpush.bf16.msra.mxu0 0
        %338 = vmatpush.bf16.msra.mxu0 0
        %339 = vmatpush.bf16.msra.mxu0 0
        %340 = vmatpush.bf16.msra.mxu0 %v327
        %341 = vmatmul.bf16.gmra.mxu0 %v331
        %v342 = vpop.f32.mrf.mxu0
        %v343 = vadd.f32 %v321, %v342
        %v344 = vpop.f32.mrf.mxu0
        %345 = vdwg.mxu0
        %346 = vst.msk [vmem:[#allocation2 + $0x2] sm:$0xff] %vm311, %v343
        %v347 = vld [vmem:[#allocation2] sm:$0xff]
        %v348 = vld [vmem:[#allocation2 + $0x1] sm:$0xff]
        %v349 = vld [vmem:[#allocation2 + $0x2] sm:$0xff]
        %v350 = vld [vmem:[#allocation2 + $0x3] sm:$0xff]
        %v351 = vld [vmem:[#allocation2 + $0x4] sm:$0xff]
        %353 = vrot.lane.b32.xlu0 %v348, 32
        %v354 = vpop.permute.xlu0 %353
        %357 = vrot.lane.b32.xlu0 %v349, 64
        %v358 = vpop.permute.xlu0 %357
        %361 = vrot.lane.b32.xlu0 %v350, 96
        %v362 = vpop.permute.xlu0 %361
        %v364 = vsel %vm311, %v347, %v354
        %vm365 = vcmask 523264
        %v366 = vsel %vm365, %v364, %v358
        %vm367 = vcmask 785408
        %v368 = vsel %vm367, %v366, %v362
        %v369 = vpack.c.bf16 %v368, %v368
        %v370 = vpack.c.bf16 %v351, %v351
        %v371 = vld [vmem:[%s4] sm:$0xf]
        %v372 = vld [vmem:[%s4 + $0x4] sm:$0xf]
        %v373 = vld [vmem:[%s4 + $0x8] sm:$0xf]
        %v374 = vld [vmem:[%s4 + $0xc] sm:$0xf]
        %v375 = vld [vmem:[%s4 + $0x10] sm:$0xf]
        %v376 = vld [vmem:[%s4 + $0x14] sm:$0xf]
        %v377 = vld [vmem:[%s4 + $0x18] sm:$0xf]
        %v378 = vld [vmem:[%s4 + $0x1c] sm:$0xf]
        %v379 = vld [vmem:[%s4 + $0x20] sm:$0xf]
        %v380 = vld [vmem:[%s4 + $0x24] sm:$0xf]
        %v381 = vld [vmem:[%s4 + $0x28] sm:$0xf]
        %v382 = vld [vmem:[%s4 + $0x2c] sm:$0xf]
        %v383 = vld [vmem:[%s4 + $0x30] sm:$0xf]
        %v384 = vld [vmem:[%s4 + $0x34] sm:$0xf]
        %v385 = vld [vmem:[%s4 + $0x38] sm:$0xf]
        %v386 = vld [vmem:[%s4 + $0x3c] sm:$0xf]
        %v387 = vld [vmem:[%s4 + $0x40] sm:$0xf]
        %v388 = vld [vmem:[%s4 + $0x44] sm:$0xf]
        %v389 = vld [vmem:[%s4 + $0x48] sm:$0xf]
        %v390 = vld [vmem:[%s4 + $0x4c] sm:$0xf]
        %v391 = vld [vmem:[%s5] sm:$0x1]
        %v393 = vperm.slane %v391, 0
        %v415 = vunpack.c.l.b16 %v371
        %v416 = vunpack.c.l.b16 %v372
        %v417 = vunpack.c.l.b16 %v373
        %v418 = vunpack.c.l.b16 %v374
        %v419 = vunpack.c.l.b16 %v375
        %v420 = vunpack.c.l.b16 %v376
        %v421 = vunpack.c.l.b16 %v377
        %v422 = vunpack.c.l.b16 %v378
        %v423 = vunpack.c.l.b16 %v379
        %v424 = vunpack.c.l.b16 %v380
        %v425 = vunpack.c.l.b16 %v381
        %v426 = vunpack.c.l.b16 %v382
        %v427 = vunpack.c.l.b16 %v383
        %v428 = vunpack.c.l.b16 %v384
        %v429 = vunpack.c.l.b16 %v385
        %v430 = vunpack.c.l.b16 %v386
        %v431 = vunpack.c.l.b16 %v387
        %v432 = vunpack.c.l.b16 %v388
        %v433 = vunpack.c.l.b16 %v389
        %v434 = vunpack.c.l.b16 %v390
        %v435 = vpack.c.b16 %v416, %v415
        %v436 = vpack.c.b16 %v418, %v417
        %v437 = vpack.c.b16 %v420, %v419
        %v438 = vpack.c.b16 %v422, %v421
        %v439 = vpack.c.b16 %v424, %v423
        %v440 = vpack.c.b16 %v426, %v425
        %v441 = vpack.c.b16 %v428, %v427
        %v442 = vpack.c.b16 %v430, %v429
        %v443 = vpack.c.b16 %v432, %v431
        %v444 = vpack.c.b16 %v434, %v433
        %v456 = vsel %vm311, %v370, 0
        %458 = vmatpush.bf16.msra.mxu0 %v442
        %459 = vmatpush.bf16.msra.mxu0 %v441
        %460 = vmatpush.bf16.msra.mxu0 %v440
        %461 = vmatpush.bf16.msra.mxu0 %v439
        %462 = vmatpush.bf16.msra.mxu0 %v438
        %463 = vmatpush.bf16.msra.mxu0 %v437
        %464 = vmatpush.bf16.msra.mxu0 %v436
        %465 = vmatpush.bf16.msra.mxu0 %v435
        %466 = vmatmul.bf16.gmra.mxu0 %v369
        %v467 = vpop.f32.mrf.mxu0
        %v468 = vadd.f32 %v393, %v467
        %v469 = vpop.f32.mrf.mxu0
        %470 = vdwg.mxu0
        %471 = vmatpush.bf16.msra.mxu0 0
        %472 = vmatpush.bf16.msra.mxu0 0
        %473 = vmatpush.bf16.msra.mxu0 0
        %474 = vmatpush.bf16.msra.mxu0 0
        %475 = vmatpush.bf16.msra.mxu0 0
        %476 = vmatpush.bf16.msra.mxu0 0
        %477 = vmatpush.bf16.msra.mxu0 %v444
        %478 = vmatpush.bf16.msra.mxu0 %v443
        %479 = vmatmul.bf16.gmra.mxu0 %v456
        %v480 = vpop.f32.mrf.mxu0
        %v481 = vadd.f32 %v468, %v480
        %v482 = vpop.f32.mrf.mxu0
        %483 = vdwg.mxu0
        %v484 = vmax.f32 %v481, 0.0
        %485 = vst.msk [vmem:[#allocation2 + $0x2] sm:$0xff] %vm311, %v484
        %v486 = vld [vmem:[#allocation2] sm:$0xff]
        %v487 = vld [vmem:[#allocation2 + $0x1] sm:$0xff]
        %v488 = vld [vmem:[#allocation2 + $0x2] sm:$0xff]
        %v489 = vld [vmem:[#allocation2 + $0x3] sm:$0xff]
        %v490 = vld [vmem:[#allocation2 + $0x4] sm:$0xff]
        %492 = vrot.lane.b32.xlu0 %v487, 32
        %v493 = vpop.permute.xlu0 %492
        %496 = vrot.lane.b32.xlu0 %v488, 64
        %v497 = vpop.permute.xlu0 %496
        %500 = vrot.lane.b32.xlu0 %v489, 96
        %v501 = vpop.permute.xlu0 %500
        %v503 = vsel %vm311, %v486, %v493
        %v504 = vsel %vm365, %v503, %v497
        %v505 = vsel %vm367, %v504, %v501
        %v506 = vpack.c.bf16 %v505, %v505
        %v507 = vpack.c.bf16 %v490, %v490
        %s508 = scalar_lea.vmem %s4, 80
        %v509 = vld [vmem:[%s508] sm:$0xf]
        %v510 = vld [vmem:[%s508 + $0x4] sm:$0xf]
        %v511 = vld [vmem:[%s508 + $0x8] sm:$0xf]
        %v512 = vld [vmem:[%s508 + $0xc] sm:$0xf]
        %v513 = vld [vmem:[%s508 + $0x10] sm:$0xf]
        %v514 = vld [vmem:[%s508 + $0x14] sm:$0xf]
        %v515 = vld [vmem:[%s508 + $0x18] sm:$0xf]
        %v516 = vld [vmem:[%s508 + $0x1c] sm:$0xf]
        %v517 = vld [vmem:[%s508 + $0x20] sm:$0xf]
        %v518 = vld [vmem:[%s508 + $0x24] sm:$0xf]
        %v519 = vld [vmem:[%s508 + $0x28] sm:$0xf]
        %v520 = vld [vmem:[%s508 + $0x2c] sm:$0xf]
        %v521 = vld [vmem:[%s508 + $0x30] sm:$0xf]
        %v522 = vld [vmem:[%s508 + $0x34] sm:$0xf]
        %v523 = vld [vmem:[%s508 + $0x38] sm:$0xf]
        %v524 = vld [vmem:[%s508 + $0x3c] sm:$0xf]
        %v525 = vld [vmem:[%s508 + $0x40] sm:$0xf]
        %v526 = vld [vmem:[%s508 + $0x44] sm:$0xf]
        %v527 = vld [vmem:[%s508 + $0x48] sm:$0xf]
        %v528 = vld [vmem:[%s508 + $0x4c] sm:$0xf]
        %s529 = scalar_lea.vmem %s5, 1
        %v530 = vld [vmem:[%s529] sm:$0x1]
        %v532 = vperm.slane %v530, 0
        %v554 = vunpack.c.l.b16 %v509
        %v555 = vunpack.c.l.b16 %v510
        %v556 = vunpack.c.l.b16 %v511
        %v557 = vunpack.c.l.b16 %v512
        %v558 = vunpack.c.l.b16 %v513
        %v559 = vunpack.c.l.b16 %v514
        %v560 = vunpack.c.l.b16 %v515
        %v561 = vunpack.c.l.b16 %v516
        %v562 = vunpack.c.l.b16 %v517
        %v563 = vunpack.c.l.b16 %v518
        %v564 = vunpack.c.l.b16 %v519
        %v565 = vunpack.c.l.b16 %v520
        %v566 = vunpack.c.l.b16 %v521
        %v567 = vunpack.c.l.b16 %v522
        %v568 = vunpack.c.l.b16 %v523
        %v569 = vunpack.c.l.b16 %v524
        %v570 = vunpack.c.l.b16 %v525
        %v571 = vunpack.c.l.b16 %v526
        %v572 = vunpack.c.l.b16 %v527
        %v573 = vunpack.c.l.b16 %v528
        %v574 = vpack.c.b16 %v555, %v554
        %v575 = vpack.c.b16 %v557, %v556
        %v576 = vpack.c.b16 %v559, %v558
        %v577 = vpack.c.b16 %v561, %v560
        %v578 = vpack.c.b16 %v563, %v562
        %v579 = vpack.c.b16 %v565, %v564
        %v580 = vpack.c.b16 %v567, %v566
        %v581 = vpack.c.b16 %v569, %v568
        %v582 = vpack.c.b16 %v571, %v570
        %v583 = vpack.c.b16 %v573, %v572
        %v595 = vsel %vm311, %v507, 0
        %597 = vmatpush.bf16.msra.mxu0 %v581
        %598 = vmatpush.bf16.msra.mxu0 %v580
        %599 = vmatpush.bf16.msra.mxu0 %v579
        %600 = vmatpush.bf16.msra.mxu0 %v578
        %601 = vmatpush.bf16.msra.mxu0 %v577
        %602 = vmatpush.bf16.msra.mxu0 %v576
        %603 = vmatpush.bf16.msra.mxu0 %v575
        %604 = vmatpush.bf16.msra.mxu0 %v574
        %605 = vmatmul.bf16.gmra.mxu0 %v506
        %v606 = vpop.f32.mrf.mxu0
        %v607 = vadd.f32 %v532, %v606
        %v608 = vpop.f32.mrf.mxu0
        %609 = vdwg.mxu0
        %610 = vmatpush.bf16.msra.mxu0 0
        %611 = vmatpush.bf16.msra.mxu0 0
        %612 = vmatpush.bf16.msra.mxu0 0
        %613 = vmatpush.bf16.msra.mxu0 0
        %614 = vmatpush.bf16.msra.mxu0 0
        %615 = vmatpush.bf16.msra.mxu0 0
        %616 = vmatpush.bf16.msra.mxu0 %v583
        %617 = vmatpush.bf16.msra.mxu0 %v582
        %618 = vmatmul.bf16.gmra.mxu0 %v595
        %v619 = vpop.f32.mrf.mxu0
        %v620 = vadd.f32 %v607, %v619
        %v621 = vpop.f32.mrf.mxu0
        %622 = vdwg.mxu0
        %v623 = vmax.f32 %v620, 0.0
        %624 = vst.msk [vmem:[#allocation2 + $0x2] sm:$0xff] %vm311, %v623
        %v625 = vld [vmem:[#allocation2] sm:$0xff]
        %v626 = vld [vmem:[#allocation2 + $0x1] sm:$0xff]
        %v627 = vld [vmem:[#allocation2 + $0x2] sm:$0xff]
        %v628 = vld [vmem:[#allocation2 + $0x3] sm:$0xff]
        %v629 = vld [vmem:[#allocation2 + $0x4] sm:$0xff]
        %631 = vrot.lane.b32.xlu0 %v626, 32
        %v632 = vpop.permute.xlu0 %631
        %635 = vrot.lane.b32.xlu0 %v627, 64
        %v636 = vpop.permute.xlu0 %635
        %639 = vrot.lane.b32.xlu0 %v628, 96
        %v640 = vpop.permute.xlu0 %639
        %v642 = vsel %vm311, %v625, %v632
        %v643 = vsel %vm365, %v642, %v636
        %v644 = vsel %vm367, %v643, %v640
        %v645 = vpack.c.bf16 %v644, %v644
        %v646 = vpack.c.bf16 %v629, %v629
        %s647 = scalar_lea.vmem %s4, 160
        %v648 = vld [vmem:[%s647] sm:$0xf]
        %v649 = vld [vmem:[%s647 + $0x4] sm:$0xf]
        %v650 = vld [vmem:[%s647 + $0x8] sm:$0xf]
        %v651 = vld [vmem:[%s647 + $0xc] sm:$0xf]
        %v652 = vld [vmem:[%s647 + $0x10] sm:$0xf]
        %v653 = vld [vmem:[%s647 + $0x14] sm:$0xf]
        %v654 = vld [vmem:[%s647 + $0x18] sm:$0xf]
        %v655 = vld [vmem:[%s647 + $0x1c] sm:$0xf]
        %v656 = vld [vmem:[%s647 + $0x20] sm:$0xf]
        %v657 = vld [vmem:[%s647 + $0x24] sm:$0xf]
        %v658 = vld [vmem:[%s647 + $0x28] sm:$0xf]
        %v659 = vld [vmem:[%s647 + $0x2c] sm:$0xf]
        %v660 = vld [vmem:[%s647 + $0x30] sm:$0xf]
        %v661 = vld [vmem:[%s647 + $0x34] sm:$0xf]
        %v662 = vld [vmem:[%s647 + $0x38] sm:$0xf]
        %v663 = vld [vmem:[%s647 + $0x3c] sm:$0xf]
        %v664 = vld [vmem:[%s647 + $0x40] sm:$0xf]
        %v665 = vld [vmem:[%s647 + $0x44] sm:$0xf]
        %v666 = vld [vmem:[%s647 + $0x48] sm:$0xf]
        %v667 = vld [vmem:[%s647 + $0x4c] sm:$0xf]
        %s668 = scalar_lea.vmem %s5, 2
        %v669 = vld [vmem:[%s668] sm:$0x1]
        %v671 = vperm.slane %v669, 0
        %v693 = vunpack.c.l.b16 %v648
        %v694 = vunpack.c.l.b16 %v649
        %v695 = vunpack.c.l.b16 %v650
        %v696 = vunpack.c.l.b16 %v651
        %v697 = vunpack.c.l.b16 %v652
        %v698 = vunpack.c.l.b16 %v653
        %v699 = vunpack.c.l.b16 %v654
        %v700 = vunpack.c.l.b16 %v655
        %v701 = vunpack.c.l.b16 %v656
        %v702 = vunpack.c.l.b16 %v657
        %v703 = vunpack.c.l.b16 %v658
        %v704 = vunpack.c.l.b16 %v659
        %v705 = vunpack.c.l.b16 %v660
        %v706 = vunpack.c.l.b16 %v661
        %v707 = vunpack.c.l.b16 %v662
        %v708 = vunpack.c.l.b16 %v663
        %v709 = vunpack.c.l.b16 %v664
        %v710 = vunpack.c.l.b16 %v665
        %v711 = vunpack.c.l.b16 %v666
        %v712 = vunpack.c.l.b16 %v667
        %v713 = vpack.c.b16 %v694, %v693
        %v714 = vpack.c.b16 %v696, %v695
        %v715 = vpack.c.b16 %v698, %v697
        %v716 = vpack.c.b16 %v700, %v699
        %v717 = vpack.c.b16 %v702, %v701
        %v718 = vpack.c.b16 %v704, %v703
        %v719 = vpack.c.b16 %v706, %v705
        %v720 = vpack.c.b16 %v708, %v707
        %v721 = vpack.c.b16 %v710, %v709
        %v722 = vpack.c.b16 %v712, %v711
        %v734 = vsel %vm311, %v646, 0
        %736 = vmatpush.bf16.msra.mxu0 %v720
        %737 = vmatpush.bf16.msra.mxu0 %v719
        %738 = vmatpush.bf16.msra.mxu0 %v718
        %739 = vmatpush.bf16.msra.mxu0 %v717
        %740 = vmatpush.bf16.msra.mxu0 %v716
        %741 = vmatpush.bf16.msra.mxu0 %v715
        %742 = vmatpush.bf16.msra.mxu0 %v714
        %743 = vmatpush.bf16.msra.mxu0 %v713
        %744 = vmatmul.bf16.gmra.mxu0 %v645
        %v745 = vpop.f32.mrf.mxu0
        %v746 = vadd.f32 %v671, %v745
        %v747 = vpop.f32.mrf.mxu0
        %748 = vdwg.mxu0
        %749 = vmatpush.bf16.msra.mxu0 0
        %750 = vmatpush.bf16.msra.mxu0 0
        %751 = vmatpush.bf16.msra.mxu0 0
        %752 = vmatpush.bf16.msra.mxu0 0
        %753 = vmatpush.bf16.msra.mxu0 0
        %754 = vmatpush.bf16.msra.mxu0 0
        %755 = vmatpush.bf16.msra.mxu0 %v722
        %756 = vmatpush.bf16.msra.mxu0 %v721
        %757 = vmatmul.bf16.gmra.mxu0 %v734
        %v758 = vpop.f32.mrf.mxu0
        %v759 = vadd.f32 %v746, %v758
        %v760 = vpop.f32.mrf.mxu0
        %761 = vdwg.mxu0
        %v762 = vmax.f32 %v759, 0.0
        %763 = vst.msk [vmem:[#allocation2 + $0x2] sm:$0xff] %vm311, %v762
        %v764 = vld [vmem:[#allocation2 + $0x2] sm:$0xff]
        %v765 = vpack.c.bf16 %v764, %v764
        %v766 = vld [vmem:[%s6] sm:$0xf]
        %v767 = vld [vmem:[%s6 + $0x4] sm:$0xf]
        %v768 = vld [vmem:[%s6 + $0x8] sm:$0xf]
        %v769 = vld [vmem:[%s6 + $0xc] sm:$0xf]
        %v770 = vld [vmem:[%s7] sm:$0x1]
        %v772 = vperm.slane %v770, 0
        %v778 = vunpack.c.l.b16 %v766
        %v779 = vunpack.c.l.b16 %v767
        %v780 = vunpack.c.l.b16 %v768
        %v781 = vunpack.c.l.b16 %v769
        %v782 = vpack.c.b16 %v779, %v778
        %v783 = vpack.c.b16 %v781, %v780
        %v787 = vsel %vm311, %v765, 0
        %789 = vmatpush.bf16.msra.mxu0 0
        %790 = vmatpush.bf16.msra.mxu0 0
        %791 = vmatpush.bf16.msra.mxu0 0
        %792 = vmatpush.bf16.msra.mxu0 0
        %793 = vmatpush.bf16.msra.mxu0 0
        %794 = vmatpush.bf16.msra.mxu0 0
        %795 = vmatpush.bf16.msra.mxu0 %v783
        %796 = vmatpush.bf16.msra.mxu0 %v782
        %797 = vmatmul.bf16.gmra.mxu0 %v787
        %v798 = vpop.f32.mrf.mxu0
        %v799 = vadd.f32 %v772, %v798
        %v800 = vpop.f32.mrf.mxu0
        %801 = vdwg.mxu0
        %v802 = vlaneseq
        %v803 = vand.u32 %v802, 127
        %vm804 = vcmp.lt.s32.totalorder %v803, 0
        %v805 = vsub.s32 0, %v803
        %v806 = vsel %vm804, %v805, %v803
        %v807 = vshrl.u32 %v806, 5
        %v808 = vand.u32 %v806, 31
        %v809 = vsub.s32 0, %v808
        %v810 = vsel %vm804, %v809, %v808
        %vm811 = vcmp.ne.s32.totalorder %v810, 0
        %vm812 = vcmp.lt.s32.totalorder %v810, 0
        %vm813 = vmand %vm812, %vm811
        %v814 = vadd.s32 %v810, 32
        %v815 = vsel %vm813, %v814, %v810
        %vm816 = vcmp.lt.s32.totalorder %v815, 16
        %vm817 = vcmp.lt.s32.totalorder %v803, 16
        %v819 = vrot.slane %v799, 7
        %v821 = vsel %vm816, %v799, %v819
        %822 = vst [vmem:[#allocation3] sm:$0x1] %v821
        %v823 = vrot.slane %v799, 5
        %v825 = vsel %vm816, %v799, %v823
        %826 = vst [vmem:[#allocation3] sm:$0x2] %v825
        %v827 = vrot.slane %v799, 3
        %v829 = vsel %vm816, %v799, %v827
        %830 = vst [vmem:[#allocation3] sm:$0x4] %v829
        %v831 = vrot.slane %v799, 1
        %v833 = vsel %vm816, %v799, %v831
        %834 = vst [vmem:[#allocation3] sm:$0x8] %v833
        %835 = vst [vmem:[#allocation3] sm:$0x10] %v821
        %836 = vst [vmem:[#allocation3] sm:$0x20] %v825
        %837 = vst [vmem:[#allocation3] sm:$0x40] %v829
        %838 = vst [vmem:[#allocation3] sm:$0x80] %v833
        %v839 = vld [vmem:[%s8] sm:$0xff]
        %v840 = vld [vmem:[%s8 + $0x8] sm:$0xff]
        %v841 = vld [vmem:[%s8 + $0x10] sm:$0xff]
        %v842 = vld [vmem:[%s8 + $0x18] sm:$0xff]
        %s843 = sld [smem:[#allocation5 + %s31]]
        %v844 = vld [vmem:[#allocation3] sm:$0x1]
        %v846 = vsel %vm311, 0.0, 0
        %848 = vmatpush.msra.mxu0 0.0
        %849 = vmatpush.msra.mxu0 0.0
        %850 = vmatpush.msra.mxu0 0.0
        %851 = vmatpush.msra.mxu0 0.0
        %852 = vmatpush.msra.mxu0 0.0
        %853 = vmatpush.msra.mxu0 0.0
        %854 = vmatpush.msra.mxu0 0.0
        %855 = vmatpush.msra.mxu0 0.0
        %856 = vmatpush.msra.mxu0 0.0
        %857 = vmatpush.msra.mxu0 0.0
        %858 = vmatpush.msra.mxu0 0.0
        %859 = vmatpush.msra.mxu0 0.0
        %860 = vmatpush.msra.mxu0 %v842
        %861 = vmatpush.msra.mxu0 %v841
        %862 = vmatpush.msra.mxu0 %v840
        %863 = vmatpush.msra.mxu0 %v839
        %864 = vmatmul.f32.gmra.mxu0 %v846
        %v865 = vpop.f32.mrf.mxu0
        %v866 = vadd.f32 0.0, %v865
        %867 = vdwg.mxu0
        %v868 = vadd.f32 %v844, %v866
        %v869 = vxor.u32 %v868, 2147483648
        %v870 = vmul.f32 %v869, 1.442695
        %v871 = vpow.pop %v870
        %v872 = vadd.f32 %v871, 1.0
        %v873 = vrcp.pop %v872
        %v874 = vmul.f32 %v872, %v873
        %v875 = vsub.f32 1.0, %v874
        %v876 = vmul.f32 %v873, %v875
        %v877 = vadd.f32 %v873, %v876
        %vm878 = vweird.f32 %v872
        %vm879 = vweird.f32 %v873
        %vm880 = vmor %vm878, %vm879
        %v881 = vsel %vm880, %v873, %v877
        %v882 = vand.u32 2147483647, %v872
        %vm883 = vcmp.eq.f32.partialorder %v882, 8.507059e+37
        %v884 = vand.u32 %v872, 2147483648
        %v885 = vor.u32 1.1754944e-38, %v884
        %v886 = vsel %vm883, %v885, %v881
        %v887 = vmul.f32 1.0, %v886
        %v888 = vtanh.pop %v868
        %v889 = vmul.f32 %v887, 0.0
        %891 = vrot.lane.b32.xlu0 %v888, 32
        %v892 = vpop.permute.xlu0 %891
        %v894 = vmul.f32 %v887, %v892
        %896 = vrot.lane.b32.xlu0 %v894, 32
        %v897 = vpop.permute.xlu0 %896
        %v899 = vadd.f32 %v889, %v897
        %v900 = vtanh.pop %v899
        %902 = vrot.lane.b32.xlu0 %v900, 32
        %v903 = vpop.permute.xlu0 %902
        %v905 = vmul.f32 %v887, %v903
        %v906 = vsel %vm817, 0, 7
        %v907 = vstv %s843
        %vm908 = vcmp.lt.s32.totalorder %v906, %v907
        %910 = vrot.lane.b32.xlu0 %v905, 64
        %v911 = vpop.permute.xlu0 %910
        %v913 = vsel %vm908, %v911, 0.0
        %vm914 = vcmask 122880
        %915 = vst.msk [vmem:[%s305] sm:$0x1] %vm914, %v913
        %vm916 = vcmask 254080
        %917 = vst.msk [vmem:[%s305 + $0x7] sm:$0x1] %vm916, %v913
        %919 = vrot.lane.b32.xlu0 %v899, 96
        %v920 = vpop.permute.xlu0 %919
        %v922 = vsel %vm908, %v920, 0.0
        %v923 = vld [vmem:[#allocation3 + $0x1] sm:$0x1]
        %v925 = vsel %vm311, %v913, 0
        %927 = vmatpush.msra.mxu0 0.0
        %928 = vmatpush.msra.mxu0 0.0
        %929 = vmatpush.msra.mxu0 0.0
        %930 = vmatpush.msra.mxu0 0.0
        %931 = vmatpush.msra.mxu0 0.0
        %932 = vmatpush.msra.mxu0 0.0
        %933 = vmatpush.msra.mxu0 0.0
        %934 = vmatpush.msra.mxu0 0.0
        %935 = vmatpush.msra.mxu0 0.0
        %936 = vmatpush.msra.mxu0 0.0
        %937 = vmatpush.msra.mxu0 0.0
        %938 = vmatpush.msra.mxu0 0.0
        %939 = vmatpush.msra.mxu0 %v842
        %940 = vmatpush.msra.mxu0 %v841
        %941 = vmatpush.msra.mxu0 %v840
        %942 = vmatpush.msra.mxu0 %v839
        %943 = vmatmul.f32.gmra.mxu0 %v925
        %v944 = vpop.f32.mrf.mxu0
        %v945 = vadd.f32 0.0, %v944
        %946 = vdwg.mxu0
        %v947 = vadd.f32 %v923, %v945
        %v948 = vxor.u32 %v947, 2147483648
        %v949 = vmul.f32 %v948, 1.442695
        %v950 = vpow.pop %v949
        %v951 = vadd.f32 %v950, 1.0
        %v952 = vrcp.pop %v951
        %v953 = vmul.f32 %v951, %v952
        %v954 = vsub.f32 1.0, %v953
        %v955 = vmul.f32 %v952, %v954
        %v956 = vadd.f32 %v952, %v955
        %vm957 = vweird.f32 %v951
        %vm958 = vweird.f32 %v952
        %vm959 = vmor %vm957, %vm958
        %v960 = vsel %vm959, %v952, %v956
        %v961 = vand.u32 2147483647, %v951
        %vm962 = vcmp.eq.f32.partialorder %v961, 8.507059e+37
        %v963 = vand.u32 %v951, 2147483648
        %v964 = vor.u32 1.1754944e-38, %v963
        %v965 = vsel %vm962, %v964, %v960
        %v966 = vmul.f32 1.0, %v965
        %v967 = vtanh.pop %v947
        %969 = vrot.lane.b32.xlu0 %v922, 32
        %v970 = vpop.permute.xlu0 %969
        %v972 = vmul.f32 %v966, %v970
        %974 = vrot.lane.b32.xlu0 %v967, 32
        %v975 = vpop.permute.xlu0 %974
        %v977 = vmul.f32 %v966, %v975
        %979 = vrot.lane.b32.xlu0 %v977, 32
        %v980 = vpop.permute.xlu0 %979
        %v982 = vadd.f32 %v972, %v980
        %v983 = vtanh.pop %v982
        %985 = vrot.lane.b32.xlu0 %v983, 32
        %v986 = vpop.permute.xlu0 %985
        %v988 = vmul.f32 %v966, %v986
        %v989 = vsel %vm817, 1, 6
        %vm990 = vcmp.lt.s32.totalorder %v989, %v907
        %992 = vrot.lane.b32.xlu0 %v988, 64
        %v993 = vpop.permute.xlu0 %992
        %v995 = vsel %vm990, %v993, 0.0
        %996 = vst.msk [vmem:[%s305 + $0x1] sm:$0x1] %vm914, %v995
        %997 = vst.msk [vmem:[%s305 + $0x6] sm:$0x1] %vm916, %v995
        %v998 = vsel %vm990, %v993, %v913
        %1000 = vrot.lane.b32.xlu0 %v982, 96
        %v1001 = vpop.permute.xlu0 %1000
        %v1003 = vsel %vm990, %v1001, %v922
        %v1004 = vld [vmem:[#allocation3 + $0x2] sm:$0x1]
        %v1006 = vsel %vm311, %v998, 0
        %1008 = vmatpush.msra.mxu0 0.0
        %1009 = vmatpush.msra.mxu0 0.0
        %1010 = vmatpush.msra.mxu0 0.0
        %1011 = vmatpush.msra.mxu0 0.0
        %1012 = vmatpush.msra.mxu0 0.0
        %1013 = vmatpush.msra.mxu0 0.0
        %1014 = vmatpush.msra.mxu0 0.0
        %1015 = vmatpush.msra.mxu0 0.0
        %1016 = vmatpush.msra.mxu0 0.0
        %1017 = vmatpush.msra.mxu0 0.0
        %1018 = vmatpush.msra.mxu0 0.0
        %1019 = vmatpush.msra.mxu0 0.0
        %1020 = vmatpush.msra.mxu0 %v842
        %1021 = vmatpush.msra.mxu0 %v841
        %1022 = vmatpush.msra.mxu0 %v840
        %1023 = vmatpush.msra.mxu0 %v839
        %1024 = vmatmul.f32.gmra.mxu0 %v1006
        %v1025 = vpop.f32.mrf.mxu0
        %v1026 = vadd.f32 0.0, %v1025
        %1027 = vdwg.mxu0
        %v1028 = vadd.f32 %v1004, %v1026
        %v1029 = vxor.u32 %v1028, 2147483648
        %v1030 = vmul.f32 %v1029, 1.442695
        %v1031 = vpow.pop %v1030
        %v1032 = vadd.f32 %v1031, 1.0
        %v1033 = vrcp.pop %v1032
        %v1034 = vmul.f32 %v1032, %v1033
        %v1035 = vsub.f32 1.0, %v1034
        %v1036 = vmul.f32 %v1033, %v1035
        %v1037 = vadd.f32 %v1033, %v1036
        %vm1038 = vweird.f32 %v1032
        %vm1039 = vweird.f32 %v1033
        %vm1040 = vmor %vm1038, %vm1039
        %v1041 = vsel %vm1040, %v1033, %v1037
        %v1042 = vand.u32 2147483647, %v1032
        %vm1043 = vcmp.eq.f32.partialorder %v1042, 8.507059e+37
        %v1044 = vand.u32 %v1032, 2147483648
        %v1045 = vor.u32 1.1754944e-38, %v1044
        %v1046 = vsel %vm1043, %v1045, %v1041
        %v1047 = vmul.f32 1.0, %v1046
        %v1048 = vtanh.pop %v1028
        %1050 = vrot.lane.b32.xlu0 %v1003, 32
        %v1051 = vpop.permute.xlu0 %1050
        %v1053 = vmul.f32 %v1047, %v1051
        %1055 = vrot.lane.b32.xlu0 %v1048, 32
        %v1056 = vpop.permute.xlu0 %1055
        %v1058 = vmul.f32 %v1047, %v1056
        %1060 = vrot.lane.b32.xlu0 %v1058, 32
        %v1061 = vpop.permute.xlu0 %1060
        %v1063 = vadd.f32 %v1053, %v1061
        %v1064 = vtanh.pop %v1063
        %1066 = vrot.lane.b32.xlu0 %v1064, 32
        %v1067 = vpop.permute.xlu0 %1066
        %v1069 = vmul.f32 %v1047, %v1067
        %v1070 = vsel %vm817, 2, 5
        %vm1071 = vcmp.lt.s32.totalorder %v1070, %v907
        %1073 = vrot.lane.b32.xlu0 %v1069, 64
        %v1074 = vpop.permute.xlu0 %1073
        %v1076 = vsel %vm1071, %v1074, 0.0
        %1077 = vst.msk [vmem:[%s305 + $0x2] sm:$0x1] %vm914, %v1076
        %1078 = vst.msk [vmem:[%s305 + $0x5] sm:$0x1] %vm916, %v1076
        %v1079 = vsel %vm1071, %v1074, %v998
        %1081 = vrot.lane.b32.xlu0 %v1063, 96
        %v1082 = vpop.permute.xlu0 %1081
        %v1084 = vsel %vm1071, %v1082, %v1003
        %v1085 = vld [vmem:[#allocation3 + $0x3] sm:$0x1]
        %v1087 = vsel %vm311, %v1079, 0
        %1089 = vmatpush.msra.mxu0 0.0
        %1090 = vmatpush.msra.mxu0 0.0
        %1091 = vmatpush.msra.mxu0 0.0
        %1092 = vmatpush.msra.mxu0 0.0
        %1093 = vmatpush.msra.mxu0 0.0
        %1094 = vmatpush.msra.mxu0 0.0
        %1095 = vmatpush.msra.mxu0 0.0
        %1096 = vmatpush.msra.mxu0 0.0
        %1097 = vmatpush.msra.mxu0 0.0
        %1098 = vmatpush.msra.mxu0 0.0
        %1099 = vmatpush.msra.mxu0 0.0
        %1100 = vmatpush.msra.mxu0 0.0
        %1101 = vmatpush.msra.mxu0 %v842
        %1102 = vmatpush.msra.mxu0 %v841
        %1103 = vmatpush.msra.mxu0 %v840
        %1104 = vmatpush.msra.mxu0 %v839
        %1105 = vmatmul.f32.gmra.mxu0 %v1087
        %v1106 = vpop.f32.mrf.mxu0
        %v1107 = vadd.f32 0.0, %v1106
        %1108 = vdwg.mxu0
        %v1109 = vadd.f32 %v1085, %v1107
        %v1110 = vxor.u32 %v1109, 2147483648
        %v1111 = vmul.f32 %v1110, 1.442695
        %v1112 = vpow.pop %v1111
        %v1113 = vadd.f32 %v1112, 1.0
        %v1114 = vrcp.pop %v1113
        %v1115 = vmul.f32 %v1113, %v1114
        %v1116 = vsub.f32 1.0, %v1115
        %v1117 = vmul.f32 %v1114, %v1116
        %v1118 = vadd.f32 %v1114, %v1117
        %vm1119 = vweird.f32 %v1113
        %vm1120 = vweird.f32 %v1114
        %vm1121 = vmor %vm1119, %vm1120
        %v1122 = vsel %vm1121, %v1114, %v1118
        %v1123 = vand.u32 2147483647, %v1113
        %vm1124 = vcmp.eq.f32.partialorder %v1123, 8.507059e+37
        %v1125 = vand.u32 %v1113, 2147483648
        %v1126 = vor.u32 1.1754944e-38, %v1125
        %v1127 = vsel %vm1124, %v1126, %v1122
        %v1128 = vmul.f32 1.0, %v1127
        %v1129 = vtanh.pop %v1109
        %1131 = vrot.lane.b32.xlu0 %v1084, 32
        %v1132 = vpop.permute.xlu0 %1131
        %v1134 = vmul.f32 %v1128, %v1132
        %1136 = vrot.lane.b32.xlu0 %v1129, 32
        %v1137 = vpop.permute.xlu0 %1136
        %v1139 = vmul.f32 %v1128, %v1137
        %1141 = vrot.lane.b32.xlu0 %v1139, 32
        %v1142 = vpop.permute.xlu0 %1141
        %v1144 = vadd.f32 %v1134, %v1142
        %v1145 = vtanh.pop %v1144
        %1147 = vrot.lane.b32.xlu0 %v1145, 32
        %v1148 = vpop.permute.xlu0 %1147
        %v1150 = vmul.f32 %v1128, %v1148
        %v1151 = vsel %vm817, 3, 4
        %vm1152 = vcmp.lt.s32.totalorder %v1151, %v907
        %1154 = vrot.lane.b32.xlu0 %v1150, 64
        %v1155 = vpop.permute.xlu0 %1154
        %v1157 = vsel %vm1152, %v1155, 0.0
        %1158 = vst.msk [vmem:[%s305 + $0x3] sm:$0x1] %vm914, %v1157
        %1159 = vst.msk [vmem:[%s305 + $0x4] sm:$0x1] %vm916, %v1157
        %v1160 = vsel %vm1152, %v1155, %v1079
        %1162 = vrot.lane.b32.xlu0 %v1144, 96
        %v1163 = vpop.permute.xlu0 %1162
        %v1165 = vsel %vm1152, %v1163, %v1084
        %v1166 = vld [vmem:[#allocation3 + $0x4] sm:$0x1]
        %v1168 = vsel %vm311, %v1160, 0
        %1170 = vmatpush.msra.mxu0 0.0
        %1171 = vmatpush.msra.mxu0 0.0
        %1172 = vmatpush.msra.mxu0 0.0
        %1173 = vmatpush.msra.mxu0 0.0
        %1174 = vmatpush.msra.mxu0 0.0
        %1175 = vmatpush.msra.mxu0 0.0
        %1176 = vmatpush.msra.mxu0 0.0
        %1177 = vmatpush.msra.mxu0 0.0
        %1178 = vmatpush.msra.mxu0 0.0
        %1179 = vmatpush.msra.mxu0 0.0
        %1180 = vmatpush.msra.mxu0 0.0
        %1181 = vmatpush.msra.mxu0 0.0
        %1182 = vmatpush.msra.mxu0 %v842
        %1183 = vmatpush.msra.mxu0 %v841
        %1184 = vmatpush.msra.mxu0 %v840
        %1185 = vmatpush.msra.mxu0 %v839
        %1186 = vmatmul.f32.gmra.mxu0 %v1168
        %v1187 = vpop.f32.mrf.mxu0
        %v1188 = vadd.f32 0.0, %v1187
        %1189 = vdwg.mxu0
        %v1190 = vadd.f32 %v1166, %v1188
        %v1191 = vxor.u32 %v1190, 2147483648
        %v1192 = vmul.f32 %v1191, 1.442695
        %v1193 = vpow.pop %v1192
        %v1194 = vadd.f32 %v1193, 1.0
        %v1195 = vrcp.pop %v1194
        %v1196 = vmul.f32 %v1194, %v1195
        %v1197 = vsub.f32 1.0, %v1196
        %v1198 = vmul.f32 %v1195, %v1197
        %v1199 = vadd.f32 %v1195, %v1198
        %vm1200 = vweird.f32 %v1194
        %vm1201 = vweird.f32 %v1195
        %vm1202 = vmor %vm1200, %vm1201
        %v1203 = vsel %vm1202, %v1195, %v1199
        %v1204 = vand.u32 2147483647, %v1194
        %vm1205 = vcmp.eq.f32.partialorder %v1204, 8.507059e+37
        %v1206 = vand.u32 %v1194, 2147483648
        %v1207 = vor.u32 1.1754944e-38, %v1206
        %v1208 = vsel %vm1205, %v1207, %v1203
        %v1209 = vmul.f32 1.0, %v1208
        %v1210 = vtanh.pop %v1190
        %1212 = vrot.lane.b32.xlu0 %v1165, 32
        %v1213 = vpop.permute.xlu0 %1212
        %v1215 = vmul.f32 %v1209, %v1213
        %1217 = vrot.lane.b32.xlu0 %v1210, 32
        %v1218 = vpop.permute.xlu0 %1217
        %v1220 = vmul.f32 %v1209, %v1218
        %1222 = vrot.lane.b32.xlu0 %v1220, 32
        %v1223 = vpop.permute.xlu0 %1222
        %v1225 = vadd.f32 %v1215, %v1223
        %v1226 = vtanh.pop %v1225
        %1228 = vrot.lane.b32.xlu0 %v1226, 32
        %v1229 = vpop.permute.xlu0 %1228
        %v1231 = vmul.f32 %v1209, %v1229
        %v1232 = vsel %vm817, 4, 3
        %vm1233 = vcmp.lt.s32.totalorder %v1232, %v907
        %1235 = vrot.lane.b32.xlu0 %v1231, 64
        %v1236 = vpop.permute.xlu0 %1235
        %v1238 = vsel %vm1233, %v1236, 0.0
        %1239 = vst.msk [vmem:[%s305 + $0x4] sm:$0x1] %vm914, %v1238
        %1240 = vst.msk [vmem:[%s305 + $0x3] sm:$0x1] %vm916, %v1238
        %v1241 = vsel %vm1233, %v1236, %v1160
        %1243 = vrot.lane.b32.xlu0 %v1225, 96
        %v1244 = vpop.permute.xlu0 %1243
        %v1246 = vsel %vm1233, %v1244, %v1165
        %v1247 = vld [vmem:[#allocation3 + $0x5] sm:$0x1]
        %v1249 = vsel %vm311, %v1241, 0
        %1251 = vmatpush.msra.mxu0 0.0
        %1252 = vmatpush.msra.mxu0 0.0
        %1253 = vmatpush.msra.mxu0 0.0
        %1254 = vmatpush.msra.mxu0 0.0
        %1255 = vmatpush.msra.mxu0 0.0
        %1256 = vmatpush.msra.mxu0 0.0
        %1257 = vmatpush.msra.mxu0 0.0
        %1258 = vmatpush.msra.mxu0 0.0
        %1259 = vmatpush.msra.mxu0 0.0
        %1260 = vmatpush.msra.mxu0 0.0
        %1261 = vmatpush.msra.mxu0 0.0
        %1262 = vmatpush.msra.mxu0 0.0
        %1263 = vmatpush.msra.mxu0 %v842
        %1264 = vmatpush.msra.mxu0 %v841
        %1265 = vmatpush.msra.mxu0 %v840
        %1266 = vmatpush.msra.mxu0 %v839
        %1267 = vmatmul.f32.gmra.mxu0 %v1249
        %v1268 = vpop.f32.mrf.mxu0
        %v1269 = vadd.f32 0.0, %v1268
        %1270 = vdwg.mxu0
        %v1271 = vadd.f32 %v1247, %v1269
        %v1272 = vxor.u32 %v1271, 2147483648
        %v1273 = vmul.f32 %v1272, 1.442695
        %v1274 = vpow.pop %v1273
        %v1275 = vadd.f32 %v1274, 1.0
        %v1276 = vrcp.pop %v1275
        %v1277 = vmul.f32 %v1275, %v1276
        %v1278 = vsub.f32 1.0, %v1277
        %v1279 = vmul.f32 %v1276, %v1278
        %v1280 = vadd.f32 %v1276, %v1279
        %vm1281 = vweird.f32 %v1275
        %vm1282 = vweird.f32 %v1276
        %vm1283 = vmor %vm1281, %vm1282
        %v1284 = vsel %vm1283, %v1276, %v1280
        %v1285 = vand.u32 2147483647, %v1275
        %vm1286 = vcmp.eq.f32.partialorder %v1285, 8.507059e+37
        %v1287 = vand.u32 %v1275, 2147483648
        %v1288 = vor.u32 1.1754944e-38, %v1287
        %v1289 = vsel %vm1286, %v1288, %v1284
        %v1290 = vmul.f32 1.0, %v1289
        %v1291 = vtanh.pop %v1271
        %1293 = vrot.lane.b32.xlu0 %v1246, 32
        %v1294 = vpop.permute.xlu0 %1293
        %v1296 = vmul.f32 %v1290, %v1294
        %1298 = vrot.lane.b32.xlu0 %v1291, 32
        %v1299 = vpop.permute.xlu0 %1298
        %v1301 = vmul.f32 %v1290, %v1299
        %1303 = vrot.lane.b32.xlu0 %v1301, 32
        %v1304 = vpop.permute.xlu0 %1303
        %v1306 = vadd.f32 %v1296, %v1304
        %v1307 = vtanh.pop %v1306
        %1309 = vrot.lane.b32.xlu0 %v1307, 32
        %v1310 = vpop.permute.xlu0 %1309
        %v1312 = vmul.f32 %v1290, %v1310
        %v1313 = vsel %vm817, 5, 2
        %vm1314 = vcmp.lt.s32.totalorder %v1313, %v907
        %1316 = vrot.lane.b32.xlu0 %v1312, 64
        %v1317 = vpop.permute.xlu0 %1316
        %v1319 = vsel %vm1314, %v1317, 0.0
        %1320 = vst.msk [vmem:[%s305 + $0x5] sm:$0x1] %vm914, %v1319
        %1321 = vst.msk [vmem:[%s305 + $0x2] sm:$0x1] %vm916, %v1319
        %v1322 = vsel %vm1314, %v1317, %v1241
        %1324 = vrot.lane.b32.xlu0 %v1306, 96
        %v1325 = vpop.permute.xlu0 %1324
        %v1327 = vsel %vm1314, %v1325, %v1246
        %v1328 = vld [vmem:[#allocation3 + $0x6] sm:$0x1]
        %v1330 = vsel %vm311, %v1322, 0
        %1332 = vmatpush.msra.mxu0 0.0
        %1333 = vmatpush.msra.mxu0 0.0
        %1334 = vmatpush.msra.mxu0 0.0
        %1335 = vmatpush.msra.mxu0 0.0
        %1336 = vmatpush.msra.mxu0 0.0
        %1337 = vmatpush.msra.mxu0 0.0
        %1338 = vmatpush.msra.mxu0 0.0
        %1339 = vmatpush.msra.mxu0 0.0
        %1340 = vmatpush.msra.mxu0 0.0
        %1341 = vmatpush.msra.mxu0 0.0
        %1342 = vmatpush.msra.mxu0 0.0
        %1343 = vmatpush.msra.mxu0 0.0
        %1344 = vmatpush.msra.mxu0 %v842
        %1345 = vmatpush.msra.mxu0 %v841
        %1346 = vmatpush.msra.mxu0 %v840
        %1347 = vmatpush.msra.mxu0 %v839
        %1348 = vmatmul.f32.gmra.mxu0 %v1330
        %v1349 = vpop.f32.mrf.mxu0
        %v1350 = vadd.f32 0.0, %v1349
        %1351 = vdwg.mxu0
        %v1352 = vadd.f32 %v1328, %v1350
        %v1353 = vxor.u32 %v1352, 2147483648
        %v1354 = vmul.f32 %v1353, 1.442695
        %v1355 = vpow.pop %v1354
        %v1356 = vadd.f32 %v1355, 1.0
        %v1357 = vrcp.pop %v1356
        %v1358 = vmul.f32 %v1356, %v1357
        %v1359 = vsub.f32 1.0, %v1358
        %v1360 = vmul.f32 %v1357, %v1359
        %v1361 = vadd.f32 %v1357, %v1360
        %vm1362 = vweird.f32 %v1356
        %vm1363 = vweird.f32 %v1357
        %vm1364 = vmor %vm1362, %vm1363
        %v1365 = vsel %vm1364, %v1357, %v1361
        %v1366 = vand.u32 2147483647, %v1356
        %vm1367 = vcmp.eq.f32.partialorder %v1366, 8.507059e+37
        %v1368 = vand.u32 %v1356, 2147483648
        %v1369 = vor.u32 1.1754944e-38, %v1368
        %v1370 = vsel %vm1367, %v1369, %v1365
        %v1371 = vmul.f32 1.0, %v1370
        %v1372 = vtanh.pop %v1352
        %1374 = vrot.lane.b32.xlu0 %v1327, 32
        %v1375 = vpop.permute.xlu0 %1374
        %v1377 = vmul.f32 %v1371, %v1375
        %1379 = vrot.lane.b32.xlu0 %v1372, 32
        %v1380 = vpop.permute.xlu0 %1379
        %v1382 = vmul.f32 %v1371, %v1380
        %1384 = vrot.lane.b32.xlu0 %v1382, 32
        %v1385 = vpop.permute.xlu0 %1384
        %v1387 = vadd.f32 %v1377, %v1385
        %v1388 = vtanh.pop %v1387
        %1390 = vrot.lane.b32.xlu0 %v1388, 32
        %v1391 = vpop.permute.xlu0 %1390
        %v1393 = vmul.f32 %v1371, %v1391
        %v1394 = vsel %vm817, 6, 1
        %vm1395 = vcmp.lt.s32.totalorder %v1394, %v907
        %1397 = vrot.lane.b32.xlu0 %v1393, 64
        %v1398 = vpop.permute.xlu0 %1397
        %v1400 = vsel %vm1395, %v1398, 0.0
        %1401 = vst.msk [vmem:[%s305 + $0x6] sm:$0x1] %vm914, %v1400
        %1402 = vst.msk [vmem:[%s305 + $0x1] sm:$0x1] %vm916, %v1400
        %v1403 = vsel %vm1395, %v1398, %v1322
        %1405 = vrot.lane.b32.xlu0 %v1387, 96
        %v1406 = vpop.permute.xlu0 %1405
        %v1408 = vsel %vm1395, %v1406, %v1327
        %v1409 = vld [vmem:[#allocation3 + $0x7] sm:$0x1]
        %v1411 = vsel %vm311, %v1403, 0
        %1413 = vmatpush.msra.mxu0 0.0
        %1414 = vmatpush.msra.mxu0 0.0
        %1415 = vmatpush.msra.mxu0 0.0
        %1416 = vmatpush.msra.mxu0 0.0
        %1417 = vmatpush.msra.mxu0 0.0
        %1418 = vmatpush.msra.mxu0 0.0
        %1419 = vmatpush.msra.mxu0 0.0
        %1420 = vmatpush.msra.mxu0 0.0
        %1421 = vmatpush.msra.mxu0 0.0
        %1422 = vmatpush.msra.mxu0 0.0
        %1423 = vmatpush.msra.mxu0 0.0
        %1424 = vmatpush.msra.mxu0 0.0
        %1425 = vmatpush.msra.mxu0 %v842
        %1426 = vmatpush.msra.mxu0 %v841
        %1427 = vmatpush.msra.mxu0 %v840
        %1428 = vmatpush.msra.mxu0 %v839
        %1429 = vmatmul.f32.gmra.mxu0 %v1411
        %v1430 = vpop.f32.mrf.mxu0
        %v1431 = vadd.f32 0.0, %v1430
        %1432 = vdwg.mxu0
        %v1433 = vadd.f32 %v1409, %v1431
        %v1434 = vxor.u32 %v1433, 2147483648
        %v1435 = vmul.f32 %v1434, 1.442695
        %v1436 = vpow.pop %v1435
        %v1437 = vadd.f32 %v1436, 1.0
        %v1438 = vrcp.pop %v1437
        %v1439 = vmul.f32 %v1437, %v1438
        %v1440 = vsub.f32 1.0, %v1439
        %v1441 = vmul.f32 %v1438, %v1440
        %v1442 = vadd.f32 %v1438, %v1441
        %vm1443 = vweird.f32 %v1437
        %vm1444 = vweird.f32 %v1438
        %vm1445 = vmor %vm1443, %vm1444
        %v1446 = vsel %vm1445, %v1438, %v1442
        %v1447 = vand.u32 2147483647, %v1437
        %vm1448 = vcmp.eq.f32.partialorder %v1447, 8.507059e+37
        %v1449 = vand.u32 %v1437, 2147483648
        %v1450 = vor.u32 1.1754944e-38, %v1449
        %v1451 = vsel %vm1448, %v1450, %v1446
        %v1452 = vmul.f32 1.0, %v1451
        %v1453 = vtanh.pop %v1433
        %1455 = vrot.lane.b32.xlu0 %v1408, 32
        %v1456 = vpop.permute.xlu0 %1455
        %v1458 = vmul.f32 %v1452, %v1456
        %1460 = vrot.lane.b32.xlu0 %v1453, 32
        %v1461 = vpop.permute.xlu0 %1460
        %v1463 = vmul.f32 %v1452, %v1461
        %1465 = vrot.lane.b32.xlu0 %v1463, 32
        %v1466 = vpop.permute.xlu0 %1465
        %v1468 = vadd.f32 %v1458, %v1466
        %v1469 = vtanh.pop %v1468
        %1471 = vrot.lane.b32.xlu0 %v1469, 32
        %v1472 = vpop.permute.xlu0 %1471
        %v1474 = vmul.f32 %v1452, %v1472
        %v1475 = vsel %vm817, 7, 0
        %vm1476 = vcmp.lt.s32.totalorder %v1475, %v907
        %1478 = vrot.lane.b32.xlu0 %v1474, 64
        %v1479 = vpop.permute.xlu0 %1478
        %v1481 = vsel %vm1476, %v1479, 0.0
        %1482 = vst.msk [vmem:[%s305 + $0x7] sm:$0x1] %vm914, %v1481
        %1483 = vst.msk [vmem:[%s305] sm:$0x1] %vm916, %v1481
        %s1484 = sand.u32 %s212, 1
        %s1485 = scalar_lea.sflag [#allocation7], %s1484
        %s1486 = sand.u32 %s212, 1
        %s1487 = smul.addr %s1486, 8
        %s1488 = scalar_lea.vmem [#allocation6], %s1487
        // Predicated region
        $region53: #{tpu_custom_call.1} parent=51 // pred_check
          %p1489 = pneg %p222
        $region54: #{tpu_custom_call.1} parent=51 // pred_check_branch
          %1491 = sbr.rel (%p1489) target = $region56
        $region55: #{tpu_custom_call.1} parent=51 // pred_region
          %1493 = vsyncadd %s1485, 0
          %s1494 = smul.addr %s31, 8
          %s1495 = scalar_lea.hbm %s9, %s1494
          %s1497 = sshll.u32 %s1488, 4
          %s1498 = int_to_ptr.vmem [resolvable:$true] %s1497
          %s1499 = sshll.u32 %s1495, 4
          %s1500 = int_to_ptr.hbm [resolvable:$true] %s1499
          %1502 = dma.vmem_to_hbm [thread:$0]  %s1498, 128, %s1500, %s1485
        $region56: #{tpu_custom_call.1} parent=51 // pred_fallthru
          _
      $region52: #{tpu_custom_call.1} parent=5 // pred_fallthru
        _
      %p1503 = scmp.le.s32.totalorder 2, %s26
      // Predicated region
      $region57: #{tpu_custom_call.1} parent=5 // pred_check
        %p1504 = pneg %p1503
      $region58: #{tpu_custom_call.1} parent=5 // pred_check_branch
        %1506 = sbr.rel (%p1504) target = $region60
      $region59: #{tpu_custom_call.1} parent=5 // pred_region
        %s1507 = ssub.s32 %s26, 2
        // Predicated region
        $region61: #{tpu_custom_call.1} parent=59 // pred_check
          %p1508 = pneg %p228
        $region62: #{tpu_custom_call.1} parent=59 // pred_check_branch
          %1510 = sbr.rel (%p1508) target = $region64
        $region63: #{tpu_custom_call.1} parent=59 // pred_region
          %s1511 = sand.u32 %s213, 1
          %s1512 = scalar_lea.sflag [#allocation7], %s1511
          %s1513 = sand.u32 %s213, 1
          %s1514 = smul.addr %s1513, 8
          %s1515 = scalar_lea.vmem [#allocation6], %s1514
          %1517 = dma.done %s1512, 128
        $region64: #{tpu_custom_call.1} parent=59 // pred_fallthru
          _
      $region60: #{tpu_custom_call.1} parent=5 // pred_fallthru
        _
    $region6: #{tpu_custom_call.1} parent=1 // loop_footer
      %s30 = sadd.s32 1, %s26
    $region7: #{tpu_custom_call.1} parent=1 // loop_footer_branch
      %25 = sbr.rel target = $region3
    $region8: #{tpu_custom_call.1} parent=1 // loop_exit
      _
    %1518 = vsyncpa [#allocation7], 1
    %s1519 = scalar_lea.sflag [#allocation7], 1
    %1520 = vsyncpa %s1519, 1

</llo_original>
